<compile_context>
chip_gen: v5e
topology: v5e:2x2
jax: 0.10.0
libtpu: 0.0.40
codegen_flags: <defaults>
</compile_context>

<pallas_src>
import jax
import jax.numpy as jnp
from jax.experimental import pallas as pl
from jax.experimental.pallas import tpu as pltpu


# ----------------------------------------------------------------------------
# Per-generation VMEM budget (review item: raise above the default scoped
# limit on v5e/v6e, stay inside v7x's 64 MiB physical VMEM).
# ----------------------------------------------------------------------------
def _vmem_limit_bytes():
    try:
        info = pltpu.get_tpu_info()
        cap = getattr(info, "vmem_capacity_bytes", None)
        if cap:
            return int(cap) * 3 // 4        # ~96 MiB on v5e/v6e, ~48 MiB on v7x
    except Exception:
        pass
    return 48 * 1024 * 1024                 # safe on every generation


_VMEM_LIMIT = _vmem_limit_bytes()


def _compiler_params(sem):
    return pltpu.CompilerParams(dimension_semantics=sem,
                                vmem_limit_bytes=_VMEM_LIMIT)


# ----------------------------------------------------------------------------
# In-kernel helper
# ----------------------------------------------------------------------------
def _rmsnorm(x, w, eps):
    # x: (T, C) any float dtype, w: (1, C) f32 -> f32 result
    x = x.astype(jnp.float32)
    var = jnp.mean(x * x, axis=-1, keepdims=True)
    return x * jax.lax.rsqrt(var + eps) * w


# ----------------------------------------------------------------------------
# QKV projection kernel: RMSNorm1 -> one of {Q, K, V} per outer grid step.
# grid = (3, B, T//tq); weight chunk index depends only on the outermost axis,
# so each (C, C) chunk of c_attn is DMA'd ~once per layer (not per token tile),
# and the per-step VMEM weight footprint is (C, C) instead of (C, 3C).
# Output is head-major (3, B, H, T, hd) bf16 so the attention kernel never
# relayouts K/V per kv step.
# ----------------------------------------------------------------------------
def make_qkv_kernel(n_head, eps, scale):
    def kernel(x_ref, n1w_ref, w_ref, b_ref, qkv_ref):
        TQ, C = x_ref.shape
        hd = C // n_head
        oi = pl.program_id(0)                       # 0 -> Q, 1 -> K, 2 -> V
        # RMSNorm recomputed per chunk (3x) — cheap VPU work vs. the matmul;
        # this keeps the weight chunk outermost so it is not re-fetched per tile.
        h = _rmsnorm(x_ref[...], n1w_ref[...], eps).astype(jnp.bfloat16)
        chunk = (jnp.dot(h, w_ref[...], preferred_element_type=jnp.float32)
                 + b_ref[...])                      # (TQ, C) f32
        chunk = chunk * jnp.where(oi == 0, jnp.float32(scale), jnp.float32(1.0))
        # One head-major relayout per (chunk, batch, token-tile) — amortized
        # over all kv steps of the flash kernel.
        qkv_ref[...] = (chunk.reshape(TQ, n_head, hd)
                        .swapaxes(0, 1).astype(jnp.bfloat16))
    return kernel


def run_qkv(x, lp, cfg, tq):
    B, T, C = x.shape
    nh = cfg["n_head"]
    hd = C // nh
    eps = cfg["norm_eps"]
    scale = 1.0 / (hd ** 0.5)
    assert T % tq == 0 and C % nh == 0
    return pl.pallas_call(
        make_qkv_kernel(nh, eps, scale),
        out_shape=jax.ShapeDtypeStruct((3, B, nh, T, hd), jnp.bfloat16),
        grid=(3, B, T // tq),
        in_specs=[
            pl.BlockSpec((None, tq, C), lambda oi, b, ti: (b, ti, 0)),   # x tile
            pl.BlockSpec((1, C), lambda oi, b, ti: (0, 0)),              # norm_1 w
            pl.BlockSpec((C, C), lambda oi, b, ti: (0, oi)),             # c_attn W chunk
            pl.BlockSpec((1, C), lambda oi, b, ti: (0, oi)),             # c_attn b chunk
        ],
        out_specs=pl.BlockSpec((None, None, nh, tq, hd),
                               lambda oi, b, ti: (oi, b, 0, ti, 0)),
        compiler_params=_compiler_params(("parallel", "parallel", "parallel")),
    )(x, lp["n1w"], lp["attn_w"], lp["attn_b"])


# ----------------------------------------------------------------------------
# Flash-attention kernel: online-softmax over precomputed head-major Q/K/V,
# then output projection + residual.
# grid = (B, q-tiles, kv-tiles); kv axis is the online-softmax reduction.
# K/V index_maps clamp the kv block index to the last causally-valid tile so
# fully-future tiles issue no DMA (compute skipped by pl.when).
# ----------------------------------------------------------------------------
def make_attn_kernel(tq, tk):
    def kernel(q_ref, k_ref, v_ref, x_ref, pw_ref, pb_ref, o_ref,
               m_sc, l_sc, acc_sc):
        qi = pl.program_id(1)
        ki = pl.program_id(2)
        H, TQ, hd = q_ref.shape
        C = x_ref.shape[-1]

        @pl.when(ki == 0)
        def _init():
            m_sc[...] = jnp.full_like(m_sc, -jnp.inf)
            l_sc[...] = jnp.zeros_like(l_sc)
            acc_sc[...] = jnp.zeros_like(acc_sc)

        # Skip KV tiles entirely in the causal future of this q-tile.
        @pl.when(ki * tk < (qi + 1) * tq)
        def _online_softmax_step():
            # Batched over heads; Q/K/V already head-major bf16 — no relayouts.
            s = jnp.einsum('hqd,hkd->hqk', q_ref[...], k_ref[...],
                           preferred_element_type=jnp.float32)     # (H, TQ, tk)
            qpos = qi * tq + jax.lax.broadcasted_iota(jnp.int32, (TQ, tk), 0)
            kpos = ki * tk + jax.lax.broadcasted_iota(jnp.int32, (TQ, tk), 1)
            s = jnp.where((qpos >= kpos)[None, :, :], s, -1e30)

            m_prev = m_sc[...]
            m_new = jnp.maximum(m_prev, jnp.max(s, axis=-1, keepdims=True))
            alpha = jnp.exp(m_prev - m_new)
            p = jnp.exp(s - m_new)
            l_sc[...] = alpha * l_sc[...] + jnp.sum(p, axis=-1, keepdims=True)
            acc_sc[...] = alpha * acc_sc[...] + jnp.einsum(
                'hqk,hkd->hqd', p.astype(jnp.bfloat16), v_ref[...],
                preferred_element_type=jnp.float32)
            m_sc[...] = m_new

        @pl.when(ki == pl.num_programs(2) - 1)
        def _finalize():
            y = acc_sc[...] * pl.reciprocal(l_sc[...], approx=True)
            y = y.swapaxes(0, 1).reshape(TQ, C).astype(jnp.bfloat16)
            out = (jnp.dot(y, pw_ref[...], preferred_element_type=jnp.float32)
                   + pb_ref[...])
            o_ref[...] = (x_ref[...].astype(jnp.float32) + out).astype(o_ref.dtype)
    return kernel


def run_attn(x, qkv, lp, cfg, tq, tk):
    B, T, C = x.shape
    nh = cfg["n_head"]
    hd = C // nh
    assert T % tq == 0 and T % tk == 0

    def q_map(b, qi, ki):
        return (0, b, 0, qi, 0)

    def k_map(b, qi, ki):
        last = ((qi + 1) * tq - 1) // tk          # last causally-valid kv tile
        return (1, b, 0, jnp.minimum(ki, last), 0)

    def v_map(b, qi, ki):
        last = ((qi + 1) * tq - 1) // tk
        return (2, b, 0, jnp.minimum(ki, last), 0)

    const2 = lambda b, qi, ki: (0, 0)
    # TODO(synk): on v7x, proj_w (C,C) could be single-buffered
    # (pipeline_mode=pl.Buffered(1)) since its block index is constant.
    return pl.pallas_call(
        make_attn_kernel(tq, tk),
        out_shape=jax.ShapeDtypeStruct((B, T, C), jnp.bfloat16),
        grid=(B, T // tq, T // tk),
        in_specs=[
            pl.BlockSpec((None, None, nh, tq, hd), q_map),     # Q (head-major)
            pl.BlockSpec((None, None, nh, tk, hd), k_map),     # K (clamped)
            pl.BlockSpec((None, None, nh, tk, hd), v_map),     # V (clamped)
            pl.BlockSpec((None, tq, C), lambda b, qi, ki: (b, qi, 0)),  # residual x
            pl.BlockSpec((C, C), const2),                      # c_proj W
            pl.BlockSpec((1, C), const2),                      # c_proj b
        ],
        out_specs=pl.BlockSpec((None, tq, C), lambda b, qi, ki: (b, qi, 0)),
        scratch_shapes=[
            pltpu.VMEM((nh, tq, 1), jnp.float32),    # running max m
            pltpu.VMEM((nh, tq, 1), jnp.float32),    # running denom l
            pltpu.VMEM((nh, tq, hd), jnp.float32),   # output accumulator
        ],
        compiler_params=_compiler_params(("parallel", "parallel", "arbitrary")),
    )(qkv, qkv, qkv, x, lp["proj_w"], lp["proj_b"])


# ----------------------------------------------------------------------------
# MLP kernel: RMSNorm2 -> SwiGLU (hidden dim tiled as a reduction) -> residual
# grid = (B, num_t_tiles, num_h_tiles)
# ----------------------------------------------------------------------------
def make_mlp_kernel(eps):
    def kernel(x_ref, n2w_ref, usw_ref, usb_ref, uw_ref, ub_ref,
               dw_ref, db_ref, o_ref, h2_sc, acc_sc):
        hi = pl.program_id(2)

        @pl.when(hi == 0)
        def _init():
            h2_sc[...] = _rmsnorm(x_ref[...], n2w_ref[...], eps).astype(jnp.bfloat16)
            acc_sc[...] = jnp.zeros_like(acc_sc)

        h2 = h2_sc[...]
        swish = jax.nn.silu(jnp.dot(h2, usw_ref[...],
                                    preferred_element_type=jnp.float32)
                            + usb_ref[...])
        vx = (jnp.dot(h2, uw_ref[...], preferred_element_type=jnp.float32)
              + ub_ref[...])
        acc_sc[...] += jnp.dot((swish * vx).astype(jnp.bfloat16), dw_ref[...],
                               preferred_element_type=jnp.float32)

        @pl.when(hi == pl.num_programs(2) - 1)
        def _finalize():
            o_ref[...] = (x_ref[...].astype(jnp.float32) + acc_sc[...]
                          + db_ref[...]).astype(o_ref.dtype)
    return kernel


def run_mlp(x, lp, cfg, tq, th):
    B, T, C = x.shape
    H = cfg["hidden_size"]
    eps = cfg["norm_eps"]
    assert T % tq == 0 and H % th == 0
    return pl.pallas_call(
        make_mlp_kernel(eps),
        out_shape=jax.ShapeDtypeStruct((B, T, C), jnp.bfloat16),
        grid=(B, T // tq, H // th),
        in_specs=[
            pl.BlockSpec((None, tq, C), lambda b, ti, hi: (b, ti, 0)),
            pl.BlockSpec((1, C), lambda b, ti, hi: (0, 0)),       # norm_2 w
            pl.BlockSpec((C, th), lambda b, ti, hi: (0, hi)),     # up_proj_swish W
            pl.BlockSpec((1, th), lambda b, ti, hi: (0, hi)),     # up_proj_swish b
            pl.BlockSpec((C, th), lambda b, ti, hi: (0, hi)),     # up_proj W
            pl.BlockSpec((1, th), lambda b, ti, hi: (0, hi)),     # up_proj b
            pl.BlockSpec((th, C), lambda b, ti, hi: (hi, 0)),     # down_proj W
            pl.BlockSpec((1, C), lambda b, ti, hi: (0, 0)),       # down_proj b
        ],
        out_specs=pl.BlockSpec((None, tq, C), lambda b, ti, hi: (b, ti, 0)),
        scratch_shapes=[
            pltpu.VMEM((tq, C), jnp.bfloat16),    # cached normalized input
            pltpu.VMEM((tq, C), jnp.float32),     # down-proj accumulator
        ],
        compiler_params=_compiler_params(("parallel", "parallel", "arbitrary")),
    )(x, lp["n2w"], lp["usw"], lp["usb"], lp["uw"], lp["ub"],
      lp["dw"], lp["db"])


# ----------------------------------------------------------------------------
# Final RMSNorm + tied lm_head.  B folded into the token axis (fewer full-wte
# passes), RMSNorm hoisted out of the vocab-tile loop into VMEM scratch,
# contracting directly against wte (V, C) via dot_general (no transpose).
# grid = (num_t_tiles, num_v_tiles)
# ----------------------------------------------------------------------------
def make_head_kernel(eps):
    def kernel(x_ref, nfw_ref, wte_ref, o_ref, h_sc):
        @pl.when(pl.program_id(1) == 0)
        def _():
            h_sc[...] = _rmsnorm(x_ref[...], nfw_ref[...], eps).astype(jnp.bfloat16)
        # logits = h @ wte.T, contracting dim 1 of both operands.
        o_ref[...] = jax.lax.dot_general(
            h_sc[...], wte_ref[...],
            dimension_numbers=(((1,), (1,)), ((), ())),
            preferred_element_type=jnp.float32)
    return kernel


def run_head(x, norm_f_w, wte, eps, tq, tv):
    B, T, C = x.shape
    V = wte.shape[0]
    BT = B * T
    assert BT % tq == 0 and V % tv == 0
    x2d = x.reshape(BT, C)
    logits = pl.pallas_call(
        make_head_kernel(eps),
        out_shape=jax.ShapeDtypeStruct((BT, V), jnp.float32),
        grid=(BT // tq, V // tv),
        in_specs=[
            pl.BlockSpec((tq, C), lambda ti, vi: (ti, 0)),
            pl.BlockSpec((1, C), lambda ti, vi: (0, 0)),
            pl.BlockSpec((tv, C), lambda ti, vi: (vi, 0)),     # tied wte block
        ],
        out_specs=pl.BlockSpec((tq, tv), lambda ti, vi: (ti, vi)),
        scratch_shapes=[pltpu.VMEM((tq, C), jnp.bfloat16)],    # cached norm_f(x)
        compiler_params=_compiler_params(("parallel", "arbitrary")),
    )(x2d, norm_f_w, wte)
    return logits.reshape(B, T, V)


# ----------------------------------------------------------------------------
# Parameter initialization (matches TuringLLM._init_weights semantics)
# Big matrices stored in bf16 (halves HBM weight traffic); biases/norms in f32.
# ----------------------------------------------------------------------------
def init_params(key, cfg):
    V, C, H = cfg["vocab_size"], cfg["n_embd"], cfg["hidden_size"]
    L, BS = cfg["n_layer"], cfg["block_size"]
    std = 0.02
    down_std = 0.02 * (2 * L) ** (-0.5)     # WEIGHT_SCALE_INIT on down_proj

    def normal_bf16(k, shape, s):
        return (s * jax.random.normal(k, shape, jnp.float32)).astype(jnp.bfloat16)

    keys = jax.random.split(key, 2 + 6 * L)
    params = {
        "wte": normal_bf16(keys[0], (V, C), std),   # tied with lm_head
        "wpe": normal_bf16(keys[1], (BS, C), std),
        "norm_f": jnp.ones((1, C), jnp.float32),
        "layers": [],
    }
    ki = 2
    for _ in range(L):
        lp = {
            "n1w": jnp.ones((1, C), jnp.float32),
            "attn_w": normal_bf16(keys[ki + 0], (C, 3 * C), std),
            "attn_b": jnp.zeros((1, 3 * C), jnp.float32),
            "proj_w": normal_bf16(keys[ki + 1], (C, C), std),
            "proj_b": jnp.zeros((1, C), jnp.float32),
            "n2w": jnp.ones((1, C), jnp.float32),
            "usw": normal_bf16(keys[ki + 2], (C, H), std),
            "usb": jnp.zeros((1, H), jnp.float32),
            "uw": normal_bf16(keys[ki + 3], (C, H), std),
            "ub": jnp.zeros((1, H), jnp.float32),
            "dw": normal_bf16(keys[ki + 4], (H, C), down_std),
            "db": jnp.zeros((1, C), jnp.float32),
        }
        ki += 6
        params["layers"].append(lp)
    return params


# ----------------------------------------------------------------------------
# Full forward pass (targets=None path: returns logits)
# ----------------------------------------------------------------------------
def turing_llm_forward(idx, params, cfg, tiles=None):
    B, T = idx.shape
    assert T <= cfg["block_size"]
    tiles = tiles or {}
    tq = tiles.get("tq", min(T, 256))
    tk = tiles.get("tk", min(T, 256))
    th = tiles.get("th", min(cfg["hidden_size"], 512))
    tv = tiles.get("tv", min(cfg["vocab_size"], 512))
    tqh = tiles.get("tqh", min(B * T, 512))

    # Embedding gathers kept as glue (plain JAX); residual stream stored bf16.
    x = (params["wte"][idx].astype(jnp.float32)
         + params["wpe"][:T].astype(jnp.float32)[None, :, :]).astype(jnp.bfloat16)

    # TODO(synk): overlap next-layer weight DMA with current-layer compute
    # (cross-call DMA futures or a fused per-layer grid axis with scalar
    # prefetch of weight offsets).
    for lp in params["layers"]:
        qkv = run_qkv(x, lp, cfg, tq)            # (3, B, H, T, hd) bf16
        x = run_attn(x, qkv, lp, cfg, tq, tk)
        x = run_mlp(x, lp, cfg, tq, th)
    logits = run_head(x, params["norm_f"], params["wte"], cfg["norm_eps"],
                      tqh, tv)
    return logits
    # TODO(synk): cross-entropy loss branch (targets is not None) and
    # collect_latents bookkeeping are omitted; default forward path only.


# ----------------------------------------------------------------------------
# Pure-JAX reference (f32) for a correctness check
# ----------------------------------------------------------------------------
def reference_forward(idx, params, cfg):
    eps, nh = cfg["norm_eps"], cfg["n_head"]

    def rms(x, w):
        return x * jax.lax.rsqrt(jnp.mean(x * x, -1, keepdims=True) + eps) * w

    wte = params["wte"].astype(jnp.float32)
    x = wte[idx] + params["wpe"][: idx.shape[1]].astype(jnp.float32)[None]
    for lp in params["layers"]:
        B, T, C = x.shape
        hd = C // nh
        h = rms(x, lp["n1w"])
        qkv = h @ lp["attn_w"].astype(jnp.float32) + lp["attn_b"]
        q, k, v = jnp.split(qkv, 3, axis=-1)
        q = q.reshape(B, T, nh, hd).transpose(0, 2, 1, 3)
        k = k.reshape(B, T, nh, hd).transpose(0, 2, 1, 3)
        v = v.reshape(B, T, nh, hd).transpose(0, 2, 1, 3)
        s = (q @ jnp.swapaxes(k, -1, -2)) / (hd ** 0.5)
        s = jnp.where(jnp.tril(jnp.ones((T, T), bool)), s, -jnp.inf)
        y = (jax.nn.softmax(s, -1) @ v).transpose(0, 2, 1, 3).reshape(B, T, C)
        x = x + y @ lp["proj_w"].astype(jnp.float32) + lp["proj_b"]
        h2 = rms(x, lp["n2w"])
        swish = jax.nn.silu(h2 @ lp["usw"].astype(jnp.float32) + lp["usb"])
        vx = h2 @ lp["uw"].astype(jnp.float32) + lp["ub"]
        x = x + (swish * vx) @ lp["dw"].astype(jnp.float32) + lp["db"]
    return rms(x, params["norm_f"]) @ wte.T


if __name__ == "__main__":
    # Small but (8,128)-aligned config so every block is lane/sublane dense
    # and every grid axis (qkv-chunk / q / kv / h / v tiles) has > 1 step.
    cfg = dict(vocab_size=256, block_size=256, n_layer=2, n_head=2,
               n_embd=256, hidden_size=512, norm_eps=1e-5)
    tiles = dict(tq=128, tk=128, th=256, tv=128, tqh=256)

    key = jax.random.PRNGKey(0)
    pkey, ikey = jax.random.split(key)
    params = init_params(pkey, cfg)

    B, T = 2, 256
    idx = jax.random.randint(ikey, (B, T), 0, cfg["vocab_size"], dtype=jnp.int32)

    logits = turing_llm_forward(idx, params, cfg, tiles)
    logits = jax.block_until_ready(logits)

    assert logits.shape == (B, T, cfg["vocab_size"])
    assert bool(jnp.all(jnp.isfinite(logits)))

    ref = reference_forward(idx, params, cfg)
    max_err = float(jnp.max(jnp.abs(logits - ref)))
    assert max_err < 5e-2, f"max abs error vs reference too large: {max_err}"

    print("KERNEL_OK")
</pallas_src>

<mosaic_0001>
module attributes {stable_mosaic.version = 11 : i64} {
  func.func @kernel(%arg0: i32, %arg1: i32, %arg2: i32, %arg3: memref<1x128x256xbf16, #tpu.memory_space<vmem>>, %arg4: memref<1x256xf32, #tpu.memory_space<vmem>>, %arg5: memref<256x256xbf16, #tpu.memory_space<vmem>>, %arg6: memref<1x256xf32, #tpu.memory_space<vmem>>, %arg7: memref<1x1x2x128x128xbf16, #tpu.memory_space<vmem>>) attributes {dimension_semantics = [#tpu.dimension_semantics<parallel>, #tpu.dimension_semantics<parallel>, #tpu.dimension_semantics<parallel>], iteration_bounds = array<i64: 3, 2, 2>, scalar_prefetch = 0 : i64, scratch_operands = 0 : i64, tpu.core_type = #tpu.core_type<tc>, window_params = [{transform_indices = @transform_0, window_bounds = array<i64: 1, 128, 256>}, {pipeline_mode = #tpu.pipeline_mode<synchronous>, transform_indices = @transform_1, window_bounds = array<i64: 1, 256>}, {transform_indices = @transform_2, window_bounds = array<i64: 256, 256>}, {transform_indices = @transform_3, window_bounds = array<i64: 1, 256>}, {transform_indices = @transform_4, window_bounds = array<i64: 1, 1, 2, 128, 128>}]} {
    %c0 = arith.constant 0 : index
    %c0_0 = arith.constant 0 : index
    %c0_1 = arith.constant 0 : index
    %0 = vector.load %arg3[%c0, %c0_0, %c0_1] : memref<1x128x256xbf16, #tpu.memory_space<vmem>>, vector<1x128x256xbf16>
    %1 = vector.shape_cast %0 : vector<1x128x256xbf16> to vector<128x256xbf16>
    %c0_2 = arith.constant 0 : index
    %c0_3 = arith.constant 0 : index
    %2 = vector.load %arg4[%c0_2, %c0_3] : memref<1x256xf32, #tpu.memory_space<vmem>>, vector<1x256xf32>
    %3 = arith.extf %1 : vector<128x256xbf16> to vector<128x256xf32>
    %4 = arith.mulf %3, %3 : vector<128x256xf32>
    %cst = arith.constant dense<0.000000e+00> : vector<128xf32>
    %5 = vector.multi_reduction <add>, %4, %cst [1] : vector<128x256xf32> to vector<128xf32>
    %6 = vector.shape_cast %5 : vector<128xf32> to vector<128x1xf32>
    %cst_4 = arith.constant 2.560000e+02 : f32
    %7 = vector.broadcast %cst_4 : f32 to vector<128x1xf32>
    %8 = arith.divf %6, %7 : vector<128x1xf32>
    %cst_5 = arith.constant 9.99999974E-6 : f32
    %9 = vector.broadcast %cst_5 : f32 to vector<128x1xf32>
    %10 = arith.addf %8, %9 : vector<128x1xf32>
    %11 = math.rsqrt %10 : vector<128x1xf32>
    %12 = vector.broadcast %11 : vector<128x1xf32> to vector<128x256xf32>
    %13 = arith.mulf %3, %12 : vector<128x256xf32>
    %14 = vector.broadcast %2 : vector<1x256xf32> to vector<128x256xf32>
    %15 = arith.mulf %13, %14 : vector<128x256xf32>
    %16 = arith.truncf %15 : vector<128x256xf32> to vector<128x256xbf16>
    %c0_6 = arith.constant 0 : index
    %c0_7 = arith.constant 0 : index
    %17 = vector.load %arg5[%c0_6, %c0_7] : memref<256x256xbf16, #tpu.memory_space<vmem>>, vector<256x256xbf16>
    %cst_8 = arith.constant dense<0.000000e+00> : vector<128x256xf32>
    %18 = tpu.matmul %16, %17, %cst_8 {dimension_numbers = #tpu.dot_dimension_numbers<[1], [0], [0], [1], [0, 0, 1, 1], [], []>} : vector<128x256xbf16>, vector<256x256xbf16>, vector<128x256xf32> -> vector<128x256xf32>
    %c0_9 = arith.constant 0 : index
    %c0_10 = arith.constant 0 : index
    %19 = vector.load %arg6[%c0_9, %c0_10] : memref<1x256xf32, #tpu.memory_space<vmem>>, vector<1x256xf32>
    %20 = vector.broadcast %19 : vector<1x256xf32> to vector<128x256xf32>
    %21 = arith.addf %18, %20 : vector<128x256xf32>
    %c0_i32 = arith.constant 0 : i32
    %22 = arith.cmpi eq, %arg0, %c0_i32 : i32
    %cst_11 = arith.constant 0.0883883461 : f32
    %cst_12 = arith.constant 1.000000e+00 : f32
    %23 = arith.select %22, %cst_11, %cst_12 : f32
    %24 = vector.broadcast %23 : f32 to vector<128x256xf32>
    %25 = arith.mulf %21, %24 : vector<128x256xf32>
    %26 = vector.shape_cast %25 : vector<128x256xf32> to vector<128x2x128xf32>
    %27 = tpu.transpose %26, [1, 0, 2] : vector<128x2x128xf32> -> vector<2x128x128xf32>
    %28 = arith.truncf %27 : vector<2x128x128xf32> to vector<2x128x128xbf16>
    %c0_13 = arith.constant 0 : index
    %c0_14 = arith.constant 0 : index
    %c0_15 = arith.constant 0 : index
    %c0_16 = arith.constant 0 : index
    %c0_17 = arith.constant 0 : index
    %29 = vector.load %arg7[%c0_13, %c0_14, %c0_15, %c0_16, %c0_17] : memref<1x1x2x128x128xbf16, #tpu.memory_space<vmem>>, vector<1x1x2x128x128xbf16>
    %30 = vector.shape_cast %29 : vector<1x1x2x128x128xbf16> to vector<2x128x128xbf16>
    %31 = vector.shape_cast %28 : vector<2x128x128xbf16> to vector<1x1x2x128x128xbf16>
    tpu.vector_store %arg7[%c0_13, %c0_14, %c0_15, %c0_16, %c0_17], %31 {strides = array<i32>} : memref<1x1x2x128x128xbf16, #tpu.memory_space<vmem>>, vector<1x1x2x128x128xbf16>,
    return
  }
  func.func @transform_0(%arg0: i32, %arg1: i32, %arg2: i32) -> (i32, i32, i32) {
    %c0_i32 = arith.constant 0 : i32
    %c0_i32_0 = arith.constant 0 : i32
    return %arg1, %arg2, %c0_i32 : i32, i32, i32
  }
  func.func @transform_1(%arg0: i32, %arg1: i32, %arg2: i32) -> (i32, i32) {
    %c0_i32 = arith.constant 0 : i32
    %c0_i32_0 = arith.constant 0 : i32
    %c0_i32_1 = arith.constant 0 : i32
    return %c0_i32, %c0_i32_0 : i32, i32
  }
  func.func @transform_2(%arg0: i32, %arg1: i32, %arg2: i32) -> (i32, i32) {
    %c0_i32 = arith.constant 0 : i32
    %c0_i32_0 = arith.constant 0 : i32
    return %c0_i32, %arg0 : i32, i32
  }
  func.func @transform_3(%arg0: i32, %arg1: i32, %arg2: i32) -> (i32, i32) {
    %c0_i32 = arith.constant 0 : i32
    %c0_i32_0 = arith.constant 0 : i32
    return %c0_i32, %arg0 : i32, i32
  }
  func.func @transform_4(%arg0: i32, %arg1: i32, %arg2: i32) -> (i32, i32, i32, i32, i32) {
    %c0_i32 = arith.constant 0 : i32
    %c0_i32_0 = arith.constant 0 : i32
    %c0_i32_1 = arith.constant 0 : i32
    return %arg0, %arg1, %c0_i32, %arg2, %c0_i32_0 : i32, i32, i32, i32, i32
  }
}

</mosaic_0001>

<llo_original>
// kernel: tpu_custom_call.1
$region0: #{tpu_custom_call.1}
  #allocation0 [shape = 'u32[]', space=smem, size = 0x4, offset = 0x4, fixed_abs, tag = 'smem constant byte address 0x4 - core index']
  #allocation1 [shape = 'u32[72,128]{1,0:T(1,128)}', space=vmem, size = 0x9000, scoped, tag = 'internal scratch']
  #allocation10 [shape = 's32[]', space=sflag, size = 0x4, offset = 0, fixed_abs, tag = 'sflag constant byte address 0x0 - dummy sync flag']
  %s0 = inlined_call_operand.hbm [shape: bf16[2,256,256], index: 0, kind: input, shape index: {}]
  %s1 = inlined_call_operand.hbm [shape: f32[1,256], index: 1, kind: input, shape index: {}]
  %s2 = inlined_call_operand.hbm [shape: bf16[256,768], index: 2, kind: input, shape index: {}]
  %s3 = inlined_call_operand.hbm [shape: f32[1,768], index: 3, kind: input, shape index: {}]
  %s4 = inlined_call_operand.hbm [shape: bf16[3,2,2,256,128], index: 4, kind: output, shape index: {}]
  %s5 = sld [smem:[#allocation0]]
  $region65: #{tpu_custom_call.1} parent=0
    _
  %s7 = ssub.s32 1, %s5
  %s8 = scalar_select 0, %s7, %s5
  $region1: #{tpu_custom_call.1} parent=0
    #allocation2 [shape = 'u8[131072]{0}', space=vmem, size = 0x20000, scoped, tag = 'input window, operand 0']
    #allocation3 [shape = 's32[2]{0}', space=sflag, size = 0x8, scoped, tag = 'scoped memory for tpu_custom_call.1']
    #allocation4 [shape = 's32[2]{0}', space=sflag, size = 0x8, scoped, tag = 'scoped memory for tpu_custom_call.1']
    #allocation5 [shape = 'u8[1024]{0}', space=vmem, size = 0x400, scoped, tag = 'input window, operand 1, single buffered']
    #allocation6 [shape = 's32[1]{0}', space=sflag, size = 0x4, scoped, tag = 'scoped memory for tpu_custom_call.1']
    #allocation7 [shape = 'u8[262144]{0}', space=vmem, size = 0x40000, scoped, tag = 'input window, operand 2']
    #allocation8 [shape = 'u8[2048]{0}', space=vmem, size = 0x800, scoped, tag = 'input window, operand 3']
    #allocation9 [shape = 'u8[131072]{0}', space=vmem, size = 0x20000, scoped, tag = 'output window, operand 0']
    %9 = vsyncpa [#allocation3], 0
    %s10 = scalar_lea.sflag [#allocation3], 1
    %11 = vsyncpa %s10, 0
    %12 = vsyncpa [#allocation6], 0
    %13 = vsyncpa [#allocation4], 0
    %s14 = scalar_lea.sflag [#allocation4], 1
    %15 = vsyncpa %s14, 0
    loop: start=0, step=1, limit=14
    $region2: #{tpu_custom_call.1} parent=1 // loop_pre_header
      _
    $region3: #{tpu_custom_call.1} parent=1 // loop_header
      %s17 = sphi 0, %s21
      %p18 = scmp.ge.s32.totalorder %s17, 14
      %s24 = sphi 0, %s43
      %s25 = sphi 0, %s39
      %s26 = sphi 0, %s35
      %s27 = sphi 0, %s24
      %s28 = sphi 0, %s25
      %s29 = sphi 0, %s26
      %s30 = sphi 0, %s27
      %s31 = sphi 0, %s28
      %s32 = sphi 0, %s29
      %s48 = sphi 0, %s50
      %s51 = sphi 0, %s48
      %s52 = sphi 0, %s51
      %s68 = sphi 0, %s52
      %s72 = sphi 0, %s72
      %s74 = sphi 0, %s72
      %s75 = sphi 0, %s74
      %s89 = sphi 0, %s75
      %s95 = sphi 0, %s97
      %s98 = sphi 0, %s95
      %s99 = sphi 0, %s98
      %s115 = sphi 0, %s99
      %s121 = sphi 0, %s123
      %s124 = sphi 0, %s121
      %s125 = sphi 0, %s124
      %s141 = sphi 0, %s125
      %s151 = sphi 0, %s153
      %s154 = sphi 0, %s151
      %s155 = sphi 0, %s154
      %s171 = sphi 0, %s155
    $region4: #{tpu_custom_call.1} parent=1 // loop_header_branch
      %20 = sbr.rel (%p18) target = $region8
    $region5: #{tpu_custom_call.1} parent=1 // loop_body
      %s22 = ssub.s32 %s17, 1
      %s23 = ssub.s32 %s17, 2
      %s33 = sadd.s32 1, %s26
      %p34 = scmp.ge.s32.totalorder %s33, 2
      %s35 = scalar_select %p34, 0, %s33
      %s36 = sadd.s32 1, %s25
      %s37 = scalar_select %p34, %s36, %s25
      %p38 = scmp.ge.s32.totalorder %s37, 2
      %s39 = scalar_select %p38, 0, %s37
      %s40 = sadd.s32 1, %s24
      %s41 = scalar_select %p38, %s40, %s24
      %p42 = scmp.ge.s32.totalorder %s41, 3
      %s43 = scalar_select %p42, 0, %s41
      %s44 = ssub.s32 %s25, %s39
      %s45 = ssub.s32 %s26, %s35
      %s46 = sor.u32 %s44, %s45
      %p47 = scmp.eq.s32.totalorder %s46, 0
      %s49 = sadd.s32 %s48, 1
      %s50 = scalar_select %p47, %s48, %s49
      %p53 = pneg %p47
      %p54 = scmp.eq.s32.totalorder %s17, 11
      %p55 = por %p53, %p54
      %p56 = scmp.ne.s32.totalorder %s48, %s51
      %p57 = scmp.eq.s32.totalorder %s17, 0
      %p58 = por %p56, %p57
      %p59 = scmp.ne.s32.totalorder %s48, %s51
      %p60 = scmp.eq.s32.totalorder %s22, 11
      %p61 = por %p59, %p60
      %p62 = scmp.ne.s32.totalorder %s51, %s52
      %p63 = scmp.eq.s32.totalorder %s22, 0
      %p64 = por %p62, %p63
      %p65 = scmp.ne.s32.totalorder %s51, %s52
      %p66 = scmp.eq.s32.totalorder %s23, 11
      %p67 = por %p65, %p66
      %p69 = scmp.ne.s32.totalorder %s52, %s68
      %p70 = scmp.eq.s32.totalorder %s23, 0
      %p71 = por %p69, %p70
      %s73 = sadd.s32 %s72, 1
      %p76 = scmp.eq.s32.totalorder %s17, 11
      %p77 = scmp.ne.s32.totalorder %s72, %s74
      %p78 = scmp.eq.s32.totalorder %s17, 0
      %p79 = por %p77, %p78
      %p80 = scmp.ne.s32.totalorder %s72, %s74
      %p81 = scmp.eq.s32.totalorder %s22, 11
      %p82 = por %p80, %p81
      %p83 = scmp.ne.s32.totalorder %s74, %s75
      %p84 = scmp.eq.s32.totalorder %s22, 0
      %p85 = por %p83, %p84
      %p86 = scmp.ne.s32.totalorder %s74, %s75
      %p87 = scmp.eq.s32.totalorder %s23, 11
      %p88 = por %p86, %p87
      %p90 = scmp.ne.s32.totalorder %s75, %s89
      %p91 = scmp.eq.s32.totalorder %s23, 0
      %p92 = por %p90, %p91
      %s93 = ssub.s32 %s24, %s43
      %p94 = scmp.eq.s32.totalorder %s93, 0
      %s96 = sadd.s32 %s95, 1
      %s97 = scalar_select %p94, %s95, %s96
      %p100 = pneg %p94
      %p101 = scmp.eq.s32.totalorder %s17, 11
      %p102 = por %p100, %p101
      %p103 = scmp.ne.s32.totalorder %s95, %s98
      %p104 = scmp.eq.s32.totalorder %s17, 0
      %p105 = por %p103, %p104
      %p106 = scmp.ne.s32.totalorder %s95, %s98
      %p107 = scmp.eq.s32.totalorder %s22, 11
      %p108 = por %p106, %p107
      %p109 = scmp.ne.s32.totalorder %s98, %s99
      %p110 = scmp.eq.s32.totalorder %s22, 0
      %p111 = por %p109, %p110
      %p112 = scmp.ne.s32.totalorder %s98, %s99
      %p113 = scmp.eq.s32.totalorder %s23, 11
      %p114 = por %p112, %p113
      %p116 = scmp.ne.s32.totalorder %s99, %s115
      %p117 = scmp.eq.s32.totalorder %s23, 0
      %p118 = por %p116, %p117
      %s119 = ssub.s32 %s24, %s43
      %p120 = scmp.eq.s32.totalorder %s119, 0
      %s122 = sadd.s32 %s121, 1
      %s123 = scalar_select %p120, %s121, %s122
      %p126 = pneg %p120
      %p127 = scmp.eq.s32.totalorder %s17, 11
      %p128 = por %p126, %p127
      %p129 = scmp.ne.s32.totalorder %s121, %s124
      %p130 = scmp.eq.s32.totalorder %s17, 0
      %p131 = por %p129, %p130
      %p132 = scmp.ne.s32.totalorder %s121, %s124
      %p133 = scmp.eq.s32.totalorder %s22, 11
      %p134 = por %p132, %p133
      %p135 = scmp.ne.s32.totalorder %s124, %s125
      %p136 = scmp.eq.s32.totalorder %s22, 0
      %p137 = por %p135, %p136
      %p138 = scmp.ne.s32.totalorder %s124, %s125
      %p139 = scmp.eq.s32.totalorder %s23, 11
      %p140 = por %p138, %p139
      %p142 = scmp.ne.s32.totalorder %s125, %s141
      %p143 = scmp.eq.s32.totalorder %s23, 0
      %p144 = por %p142, %p143
      %s145 = ssub.s32 %s24, %s43
      %s146 = ssub.s32 %s25, %s39
      %s147 = sor.u32 %s145, %s146
      %s148 = ssub.s32 %s26, %s35
      %s149 = sor.u32 %s147, %s148
      %p150 = scmp.eq.s32.totalorder %s149, 0
      %s152 = sadd.s32 %s151, 1
      %s153 = scalar_select %p150, %s151, %s152
      %p156 = pneg %p150
      %p157 = scmp.eq.s32.totalorder %s17, 11
      %p158 = por %p156, %p157
      %p159 = scmp.ne.s32.totalorder %s151, %s154
      %p160 = scmp.eq.s32.totalorder %s17, 0
      %p161 = por %p159, %p160
      %p162 = scmp.ne.s32.totalorder %s151, %s154
      %p163 = scmp.eq.s32.totalorder %s22, 11
      %p164 = por %p162, %p163
      %p165 = scmp.ne.s32.totalorder %s154, %s155
      %p166 = scmp.eq.s32.totalorder %s22, 0
      %p167 = por %p165, %p166
      %p168 = scmp.ne.s32.totalorder %s154, %s155
      %p169 = scmp.eq.s32.totalorder %s23, 11
      %p170 = por %p168, %p169
      %p172 = scmp.ne.s32.totalorder %s155, %s171
      %p173 = scmp.eq.s32.totalorder %s23, 0
      %p174 = por %p172, %p173
      %p175 = scmp.le.s32.totalorder 1, %s17
      %p176 = scmp.lt.s32.totalorder %s17, 13
      %p177 = pnand %p175, %p176
      %p178 = pneg %p177
      // Predicated region
      $region9: #{tpu_custom_call.1} parent=5 // pred_check
        _
      $region10: #{tpu_custom_call.1} parent=5 // pred_check_branch
        %180 = sbr.rel (%p177) target = $region12
      $region11: #{tpu_custom_call.1} parent=5 // pred_region
        %s181 = ssub.s32 %s17, 1
        // Predicated region
        $region13: #{tpu_custom_call.1} parent=11 // pred_check
          %p182 = pneg %p85
        $region14: #{tpu_custom_call.1} parent=11 // pred_check_branch
          %184 = sbr.rel (%p182) target = $region16
        $region15: #{tpu_custom_call.1} parent=11 // pred_region
          %186 = vsyncadd [#allocation6], 0
          %s188 = sshll.u32 %s1, 4
          %s189 = int_to_ptr.hbm [resolvable:$true] %s188
          %s190 = sshll.u32 [#allocation5], 4
          %s191 = int_to_ptr.vmem [resolvable:$true] %s190
          %193 = dma.hbm_to_vmem [thread:$0]  %s189, 32, %s191, [#allocation6]
        $region16: #{tpu_custom_call.1} parent=11 // pred_fallthru
          _
      $region12: #{tpu_custom_call.1} parent=5 // pred_fallthru
        _
      %p194 = scmp.lt.s32.totalorder %s17, 12
      // Predicated region
      $region17: #{tpu_custom_call.1} parent=5 // pred_check
        %p195 = pneg %p194
      $region18: #{tpu_custom_call.1} parent=5 // pred_check_branch
        %197 = sbr.rel (%p195) target = $region20
      $region19: #{tpu_custom_call.1} parent=5 // pred_region
        // Predicated region
        $region21: #{tpu_custom_call.1} parent=19 // pred_check
          %p198 = pneg %p58
        $region22: #{tpu_custom_call.1} parent=19 // pred_check_branch
          %200 = sbr.rel (%p198) target = $region24
        $region23: #{tpu_custom_call.1} parent=19 // pred_region
          %s201 = sand.u32 %s17, 1
          %s202 = scalar_lea.sflag [#allocation3], %s201
          %s203 = sand.u32 %s48, 1
          %s204 = smul.addr %s203, 128
          %s205 = scalar_lea.vmem [#allocation2], %s204
          %s206 = smul.u32 16, %s26
          %208 = vsyncadd %s202, 0
          %s209 = smul.addr %s206, 2
          %s210 = smul.addr %s25, 64
          %s211 = sadd.s32 %s209, %s210
          %s212 = smul.addr %s211, 4
          %s213 = scalar_lea.hbm %s0, %s212
          %s214 = sshll.u32 %s213, 4
          %s215 = int_to_ptr.hbm [resolvable:$true] %s214
          %s216 = sshll.u32 %s205, 4
          %s217 = int_to_ptr.vmem [resolvable:$true] %s216
          %222 = dma.hbm_to_vmem [thread:$0]  %s215, 2048, %s217, %s202, 128, 128, 8
        $region24: #{tpu_custom_call.1} parent=19 // pred_fallthru
          _
        // Predicated region
        $region25: #{tpu_custom_call.1} parent=19 // pred_check
          %p223 = pneg %p105
        $region26: #{tpu_custom_call.1} parent=19 // pred_check_branch
          %225 = sbr.rel (%p223) target = $region28
        $region27: #{tpu_custom_call.1} parent=19 // pred_region
          %s226 = sand.u32 %s17, 1
          %s227 = scalar_lea.sflag [#allocation3], %s226
          %s228 = sand.u32 %s95, 1
          %s229 = smul.addr %s228, 256
          %s230 = scalar_lea.vmem [#allocation7], %s229
          %s231 = smul.u32 2, %s24
          %233 = vsyncadd %s227, 0
          %s234 = smul.addr %s231, 4
          %s235 = scalar_lea.hbm %s2, %s234
          %s236 = sshll.u32 %s235, 4
          %s237 = int_to_ptr.hbm [resolvable:$true] %s236
          %s238 = sshll.u32 %s230, 4
          %s239 = int_to_ptr.vmem [resolvable:$true] %s238
          %244 = dma.hbm_to_vmem [thread:$0]  %s237, 4096, %s239, %s227, 384, 128, 8
        $region28: #{tpu_custom_call.1} parent=19 // pred_fallthru
          _
        // Predicated region
        $region29: #{tpu_custom_call.1} parent=19 // pred_check
          %p245 = pneg %p131
        $region30: #{tpu_custom_call.1} parent=19 // pred_check_branch
          %247 = sbr.rel (%p245) target = $region32
        $region31: #{tpu_custom_call.1} parent=19 // pred_region
          %s248 = sand.u32 %s17, 1
          %s249 = scalar_lea.sflag [#allocation3], %s248
          %s250 = sand.u32 %s121, 1
          %s251 = smul.addr %s250, 2
          %s252 = scalar_lea.vmem [#allocation8], %s251
          %s253 = smul.u32 2, %s24
          %255 = vsyncadd %s249, 0
          %s256 = scalar_lea.hbm %s3, %s253
          %s258 = sshll.u32 %s256, 4
          %s259 = int_to_ptr.hbm [resolvable:$true] %s258
          %s260 = sshll.u32 %s252, 4
          %s261 = int_to_ptr.vmem [resolvable:$true] %s260
          %263 = dma.hbm_to_vmem [thread:$0]  %s259, 32, %s261, %s249
        $region32: #{tpu_custom_call.1} parent=19 // pred_fallthru
          _
      $region20: #{tpu_custom_call.1} parent=5 // pred_fallthru
        _
      %p264 = scmp.le.s32.totalorder 1, %s17
      %p265 = scmp.lt.s32.totalorder %s17, 13
      %p266 = pnand %p264, %p265
      %p267 = pneg %p266
      // Predicated region
      $region33: #{tpu_custom_call.1} parent=5 // pred_check
        _
      $region34: #{tpu_custom_call.1} parent=5 // pred_check_branch
        %269 = sbr.rel (%p266) target = $region36
      $region35: #{tpu_custom_call.1} parent=5 // pred_region
        %s270 = ssub.s32 %s17, 1
        %s271 = sand.u32 %s22, 1
        %s272 = scalar_lea.sflag [#allocation3], %s271
        %s273 = sand.u32 %s51, 1
        %s274 = smul.addr %s273, 128
        %s275 = scalar_lea.vmem [#allocation2], %s274
        // Predicated region
        $region37: #{tpu_custom_call.1} parent=35 // pred_check
          %p276 = pneg %p64
        $region38: #{tpu_custom_call.1} parent=35 // pred_check_branch
          %278 = sbr.rel (%p276) target = $region40
        $region39: #{tpu_custom_call.1} parent=35 // pred_region
          %280 = dma.done %s272, 2048
        $region40: #{tpu_custom_call.1} parent=35 // pred_fallthru
          _
        // Predicated region
        $region41: #{tpu_custom_call.1} parent=35 // pred_check
          %p281 = pneg %p85
        $region42: #{tpu_custom_call.1} parent=35 // pred_check_branch
          %283 = sbr.rel (%p281) target = $region44
        $region43: #{tpu_custom_call.1} parent=35 // pred_region
          %285 = dma.done [#allocation6], 32
        $region44: #{tpu_custom_call.1} parent=35 // pred_fallthru
          _
        %s286 = sand.u32 %s22, 1
        %s287 = scalar_lea.sflag [#allocation3], %s286
        %s288 = sand.u32 %s98, 1
        %s289 = smul.addr %s288, 256
        %s290 = scalar_lea.vmem [#allocation7], %s289
        // Predicated region
        $region45: #{tpu_custom_call.1} parent=35 // pred_check
          %p291 = pneg %p111
        $region46: #{tpu_custom_call.1} parent=35 // pred_check_branch
          %293 = sbr.rel (%p291) target = $region48
        $region47: #{tpu_custom_call.1} parent=35 // pred_region
          %295 = dma.done %s287, 4096
        $region48: #{tpu_custom_call.1} parent=35 // pred_fallthru
          _
        %s296 = sand.u32 %s22, 1
        %s297 = scalar_lea.sflag [#allocation3], %s296
        %s298 = sand.u32 %s124, 1
        %s299 = smul.addr %s298, 2
        %s300 = scalar_lea.vmem [#allocation8], %s299
        // Predicated region
        $region49: #{tpu_custom_call.1} parent=35 // pred_check
          %p301 = pneg %p137
        $region50: #{tpu_custom_call.1} parent=35 // pred_check_branch
          %303 = sbr.rel (%p301) target = $region52
        $region51: #{tpu_custom_call.1} parent=35 // pred_region
          %305 = dma.done %s297, 32
        $region52: #{tpu_custom_call.1} parent=35 // pred_fallthru
          _
        %s306 = sand.u32 %s22, 1
        %s307 = scalar_lea.sflag [#allocation3], %s306
        %s308 = sand.u32 %s51, 1
        %s309 = smul.addr %s308, 128
        %s310 = scalar_lea.vmem [#allocation2], %s309
        %p311 = pneg %p64
        %p312 = pneg %p61
        %p313 = pneg %p85
        %p314 = pneg %p82
        %s315 = sand.u32 %s22, 1
        %s316 = scalar_lea.sflag [#allocation3], %s315
        %s317 = sand.u32 %s98, 1
        %s318 = smul.addr %s317, 256
        %s319 = scalar_lea.vmem [#allocation7], %s318
        %p320 = pneg %p111
        %p321 = pneg %p108
        %s322 = sand.u32 %s22, 1
        %s323 = scalar_lea.sflag [#allocation3], %s322
        %s324 = sand.u32 %s124, 1
        %s325 = smul.addr %s324, 2
        %s326 = scalar_lea.vmem [#allocation8], %s325
        %p327 = pneg %p137
        %p328 = pneg %p134
        %p329 = pneg %p167
        %p330 = pneg %p164
        %s331 = sand.u32 %s154, 1
        %s332 = scalar_lea.sflag [#allocation4], %s331
        %s333 = sand.u32 %s154, 1
        %s334 = smul.addr %s333, 128
        %s335 = scalar_lea.vmem [#allocation9], %s334
        %s336 = smul.u32 16, %s29
        %s337 = smul.u32 2, %s27
        %s338 = smul.u32 2, %s27
        %s339 = smul.u32 16, %s29
        %v340 = vld [vmem:[%s275] sm:$0xff]
        %v341 = vld [vmem:[%s275 + $0x8] sm:$0xff]
        %v342 = vld [vmem:[%s275 + $0x10] sm:$0xff]
        %v343 = vld [vmem:[%s275 + $0x18] sm:$0xff]
        %v344 = vld [vmem:[%s275 + $0x20] sm:$0xff]
        %v345 = vld [vmem:[%s275 + $0x28] sm:$0xff]
        %v346 = vld [vmem:[%s275 + $0x30] sm:$0xff]
        %v347 = vld [vmem:[%s275 + $0x38] sm:$0xff]
        %v348 = vld [vmem:[%s275 + $0x40] sm:$0xff]
        %v349 = vld [vmem:[%s275 + $0x48] sm:$0xff]
        %v350 = vld [vmem:[%s275 + $0x50] sm:$0xff]
        %v351 = vld [vmem:[%s275 + $0x58] sm:$0xff]
        %v352 = vld [vmem:[%s275 + $0x60] sm:$0xff]
        %v353 = vld [vmem:[%s275 + $0x68] sm:$0xff]
        %v354 = vld [vmem:[%s275 + $0x70] sm:$0xff]
        %v355 = vld [vmem:[%s275 + $0x78] sm:$0xff]
        %v356 = vld [vmem:[#allocation5] sm:$0x3]
        %v357 = vunpack.c.l.bf16 %v340
        %v358 = vunpack.c.h.bf16 %v340
        %v359 = vunpack.c.l.bf16 %v341
        %v360 = vunpack.c.h.bf16 %v341
        %v361 = vunpack.c.l.bf16 %v342
        %v362 = vunpack.c.h.bf16 %v342
        %v363 = vunpack.c.l.bf16 %v343
        %v364 = vunpack.c.h.bf16 %v343
        %v365 = vunpack.c.l.bf16 %v344
        %v366 = vunpack.c.h.bf16 %v344
        %v367 = vunpack.c.l.bf16 %v345
        %v368 = vunpack.c.h.bf16 %v345
        %v369 = vunpack.c.l.bf16 %v346
        %v370 = vunpack.c.h.bf16 %v346
        %v371 = vunpack.c.l.bf16 %v347
        %v372 = vunpack.c.h.bf16 %v347
        %v373 = vunpack.c.l.bf16 %v348
        %v374 = vunpack.c.h.bf16 %v348
        %v375 = vunpack.c.l.bf16 %v349
        %v376 = vunpack.c.h.bf16 %v349
        %v377 = vunpack.c.l.bf16 %v350
        %v378 = vunpack.c.h.bf16 %v350
        %v379 = vunpack.c.l.bf16 %v351
        %v380 = vunpack.c.h.bf16 %v351
        %v381 = vunpack.c.l.bf16 %v352
        %v382 = vunpack.c.h.bf16 %v352
        %v383 = vunpack.c.l.bf16 %v353
        %v384 = vunpack.c.h.bf16 %v353
        %v385 = vunpack.c.l.bf16 %v354
        %v386 = vunpack.c.h.bf16 %v354
        %v387 = vunpack.c.l.bf16 %v355
        %v388 = vunpack.c.h.bf16 %v355
        %v389 = vmul.f32 %v357, %v357
        %v390 = vmul.f32 %v358, %v358
        %v391 = vmul.f32 %v359, %v359
        %v392 = vmul.f32 %v360, %v360
        %v393 = vmul.f32 %v361, %v361
        %v394 = vmul.f32 %v362, %v362
        %v395 = vmul.f32 %v363, %v363
        %v396 = vmul.f32 %v364, %v364
        %v397 = vmul.f32 %v365, %v365
        %v398 = vmul.f32 %v366, %v366
        %v399 = vmul.f32 %v367, %v367
        %v400 = vmul.f32 %v368, %v368
        %v401 = vmul.f32 %v369, %v369
        %v402 = vmul.f32 %v370, %v370
        %v403 = vmul.f32 %v371, %v371
        %v404 = vmul.f32 %v372, %v372
        %v405 = vmul.f32 %v373, %v373
        %v406 = vmul.f32 %v374, %v374
        %v407 = vmul.f32 %v375, %v375
        %v408 = vmul.f32 %v376, %v376
        %v409 = vmul.f32 %v377, %v377
        %v410 = vmul.f32 %v378, %v378
        %v411 = vmul.f32 %v379, %v379
        %v412 = vmul.f32 %v380, %v380
        %v413 = vmul.f32 %v381, %v381
        %v414 = vmul.f32 %v382, %v382
        %v415 = vmul.f32 %v383, %v383
        %v416 = vmul.f32 %v384, %v384
        %v417 = vmul.f32 %v385, %v385
        %v418 = vmul.f32 %v386, %v386
        %v419 = vmul.f32 %v387, %v387
        %v420 = vmul.f32 %v388, %v388
        %v421 = vadd.f32 %v389, %v390
        %422 = vadd.xlane.f32.xlu0 %v421
        %v423 = vpop.xlane.xlu0 %422
        %v424 = vadd.f32 %v391, %v392
        %425 = vadd.xlane.f32.xlu0 %v424
        %v426 = vpop.xlane.xlu0 %425
        %v427 = vadd.f32 %v393, %v394
        %428 = vadd.xlane.f32.xlu0 %v427
        %v429 = vpop.xlane.xlu0 %428
        %v430 = vadd.f32 %v395, %v396
        %431 = vadd.xlane.f32.xlu0 %v430
        %v432 = vpop.xlane.xlu0 %431
        %v433 = vadd.f32 %v397, %v398
        %434 = vadd.xlane.f32.xlu0 %v433
        %v435 = vpop.xlane.xlu0 %434
        %v436 = vadd.f32 %v399, %v400
        %437 = vadd.xlane.f32.xlu0 %v436
        %v438 = vpop.xlane.xlu0 %437
        %v439 = vadd.f32 %v401, %v402
        %440 = vadd.xlane.f32.xlu0 %v439
        %v441 = vpop.xlane.xlu0 %440
        %v442 = vadd.f32 %v403, %v404
        %443 = vadd.xlane.f32.xlu0 %v442
        %v444 = vpop.xlane.xlu0 %443
        %v445 = vadd.f32 %v405, %v406
        %446 = vadd.xlane.f32.xlu0 %v445
        %v447 = vpop.xlane.xlu0 %446
        %v448 = vadd.f32 %v407, %v408
        %449 = vadd.xlane.f32.xlu0 %v448
        %v450 = vpop.xlane.xlu0 %449
        %v451 = vadd.f32 %v409, %v410
        %452 = vadd.xlane.f32.xlu0 %v451
        %v453 = vpop.xlane.xlu0 %452
        %v454 = vadd.f32 %v411, %v412
        %455 = vadd.xlane.f32.xlu0 %v454
        %v456 = vpop.xlane.xlu0 %455
        %v457 = vadd.f32 %v413, %v414
        %458 = vadd.xlane.f32.xlu0 %v457
        %v459 = vpop.xlane.xlu0 %458
        %v460 = vadd.f32 %v415, %v416
        %461 = vadd.xlane.f32.xlu0 %v460
        %v462 = vpop.xlane.xlu0 %461
        %v463 = vadd.f32 %v417, %v418
        %464 = vadd.xlane.f32.xlu0 %v463
        %v465 = vpop.xlane.xlu0 %464
        %v466 = vadd.f32 %v419, %v420
        %467 = vadd.xlane.f32.xlu0 %v466
        %v468 = vpop.xlane.xlu0 %467
        %v469 = vrcp.pop 256.0
        %v470 = vmul.f32 256.0, %v469
        %v471 = vsub.f32 1.0, %v470
        %v472 = vmul.f32 %v469, %v471
        %v473 = vadd.f32 %v469, %v472
        %vm474 = vweird.f32 %v469
        %v475 = vsel %vm474, %v469, %v473
        %v476 = vmul.f32 %v423, %v475
        %v477 = vmul.f32 %v426, %v475
        %v478 = vmul.f32 %v429, %v475
        %v479 = vmul.f32 %v432, %v475
        %v480 = vmul.f32 %v435, %v475
        %v481 = vmul.f32 %v438, %v475
        %v482 = vmul.f32 %v441, %v475
        %v483 = vmul.f32 %v444, %v475
        %v484 = vmul.f32 %v447, %v475
        %v485 = vmul.f32 %v450, %v475
        %v486 = vmul.f32 %v453, %v475
        %v487 = vmul.f32 %v456, %v475
        %v488 = vmul.f32 %v459, %v475
        %v489 = vmul.f32 %v462, %v475
        %v490 = vmul.f32 %v465, %v475
        %v491 = vmul.f32 %v468, %v475
        %v492 = vadd.f32 %v476, 1e-05
        %v493 = vadd.f32 %v477, 1e-05
        %v494 = vadd.f32 %v478, 1e-05
        %v495 = vadd.f32 %v479, 1e-05
        %v496 = vadd.f32 %v480, 1e-05
        %v497 = vadd.f32 %v481, 1e-05
        %v498 = vadd.f32 %v482, 1e-05
        %v499 = vadd.f32 %v483, 1e-05
        %v500 = vadd.f32 %v484, 1e-05
        %v501 = vadd.f32 %v485, 1e-05
        %v502 = vadd.f32 %v486, 1e-05
        %v503 = vadd.f32 %v487, 1e-05
        %v504 = vadd.f32 %v488, 1e-05
        %v505 = vadd.f32 %v489, 1e-05
        %v506 = vadd.f32 %v490, 1e-05
        %v507 = vadd.f32 %v491, 1e-05
        %v508 = vrsqrt.pop %v492
        %v509 = vmul.f32 %v508, %v492
        %v510 = vmul.f32 %v509, %v508
        %v511 = vmul.f32 0.5, %v510
        %v512 = vsub.f32 1.5, %v511
        %v513 = vmul.f32 %v508, %v512
        %vm514 = vweird.f32 %v492
        %vm515 = vweird.f32 %v508
        %vm516 = vmor %vm514, %vm515
        %v517 = vsel %vm516, %v508, %v513
        %v518 = vrsqrt.pop %v493
        %v519 = vmul.f32 %v518, %v493
        %v520 = vmul.f32 %v519, %v518
        %v521 = vmul.f32 0.5, %v520
        %v522 = vsub.f32 1.5, %v521
        %v523 = vmul.f32 %v518, %v522
        %vm524 = vweird.f32 %v493
        %vm525 = vweird.f32 %v518
        %vm526 = vmor %vm524, %vm525
        %v527 = vsel %vm526, %v518, %v523
        %v528 = vrsqrt.pop %v494
        %v529 = vmul.f32 %v528, %v494
        %v530 = vmul.f32 %v529, %v528
        %v531 = vmul.f32 0.5, %v530
        %v532 = vsub.f32 1.5, %v531
        %v533 = vmul.f32 %v528, %v532
        %vm534 = vweird.f32 %v494
        %vm535 = vweird.f32 %v528
        %vm536 = vmor %vm534, %vm535
        %v537 = vsel %vm536, %v528, %v533
        %v538 = vrsqrt.pop %v495
        %v539 = vmul.f32 %v538, %v495
        %v540 = vmul.f32 %v539, %v538
        %v541 = vmul.f32 0.5, %v540
        %v542 = vsub.f32 1.5, %v541
        %v543 = vmul.f32 %v538, %v542
        %vm544 = vweird.f32 %v495
        %vm545 = vweird.f32 %v538
        %vm546 = vmor %vm544, %vm545
        %v547 = vsel %vm546, %v538, %v543
        %v548 = vrsqrt.pop %v496
        %v549 = vmul.f32 %v548, %v496
        %v550 = vmul.f32 %v549, %v548
        %v551 = vmul.f32 0.5, %v550
        %v552 = vsub.f32 1.5, %v551
        %v553 = vmul.f32 %v548, %v552
        %vm554 = vweird.f32 %v496
        %vm555 = vweird.f32 %v548
        %vm556 = vmor %vm554, %vm555
        %v557 = vsel %vm556, %v548, %v553
        %v558 = vrsqrt.pop %v497
        %v559 = vmul.f32 %v558, %v497
        %v560 = vmul.f32 %v559, %v558
        %v561 = vmul.f32 0.5, %v560
        %v562 = vsub.f32 1.5, %v561
        %v563 = vmul.f32 %v558, %v562
        %vm564 = vweird.f32 %v497
        %vm565 = vweird.f32 %v558
        %vm566 = vmor %vm564, %vm565
        %v567 = vsel %vm566, %v558, %v563
        %v568 = vrsqrt.pop %v498
        %v569 = vmul.f32 %v568, %v498
        %v570 = vmul.f32 %v569, %v568
        %v571 = vmul.f32 0.5, %v570
        %v572 = vsub.f32 1.5, %v571
        %v573 = vmul.f32 %v568, %v572
        %vm574 = vweird.f32 %v498
        %vm575 = vweird.f32 %v568
        %vm576 = vmor %vm574, %vm575
        %v577 = vsel %vm576, %v568, %v573
        %v578 = vrsqrt.pop %v499
        %v579 = vmul.f32 %v578, %v499
        %v580 = vmul.f32 %v579, %v578
        %v581 = vmul.f32 0.5, %v580
        %v582 = vsub.f32 1.5, %v581
        %v583 = vmul.f32 %v578, %v582
        %vm584 = vweird.f32 %v499
        %vm585 = vweird.f32 %v578
        %vm586 = vmor %vm584, %vm585
        %v587 = vsel %vm586, %v578, %v583
        %v588 = vrsqrt.pop %v500
        %v589 = vmul.f32 %v588, %v500
        %v590 = vmul.f32 %v589, %v588
        %v591 = vmul.f32 0.5, %v590
        %v592 = vsub.f32 1.5, %v591
        %v593 = vmul.f32 %v588, %v592
        %vm594 = vweird.f32 %v500
        %vm595 = vweird.f32 %v588
        %vm596 = vmor %vm594, %vm595
        %v597 = vsel %vm596, %v588, %v593
        %v598 = vrsqrt.pop %v501
        %v599 = vmul.f32 %v598, %v501
        %v600 = vmul.f32 %v599, %v598
        %v601 = vmul.f32 0.5, %v600
        %v602 = vsub.f32 1.5, %v601
        %v603 = vmul.f32 %v598, %v602
        %vm604 = vweird.f32 %v501
        %vm605 = vweird.f32 %v598
        %vm606 = vmor %vm604, %vm605
        %v607 = vsel %vm606, %v598, %v603
        %v608 = vrsqrt.pop %v502
        %v609 = vmul.f32 %v608, %v502
        %v610 = vmul.f32 %v609, %v608
        %v611 = vmul.f32 0.5, %v610
        %v612 = vsub.f32 1.5, %v611
        %v613 = vmul.f32 %v608, %v612
        %vm614 = vweird.f32 %v502
        %vm615 = vweird.f32 %v608
        %vm616 = vmor %vm614, %vm615
        %v617 = vsel %vm616, %v608, %v613
        %v618 = vrsqrt.pop %v503
        %v619 = vmul.f32 %v618, %v503
        %v620 = vmul.f32 %v619, %v618
        %v621 = vmul.f32 0.5, %v620
        %v622 = vsub.f32 1.5, %v621
        %v623 = vmul.f32 %v618, %v622
        %vm624 = vweird.f32 %v503
        %vm625 = vweird.f32 %v618
        %vm626 = vmor %vm624, %vm625
        %v627 = vsel %vm626, %v618, %v623
        %v628 = vrsqrt.pop %v504
        %v629 = vmul.f32 %v628, %v504
        %v630 = vmul.f32 %v629, %v628
        %v631 = vmul.f32 0.5, %v630
        %v632 = vsub.f32 1.5, %v631
        %v633 = vmul.f32 %v628, %v632
        %vm634 = vweird.f32 %v504
        %vm635 = vweird.f32 %v628
        %vm636 = vmor %vm634, %vm635
        %v637 = vsel %vm636, %v628, %v633
        %v638 = vrsqrt.pop %v505
        %v639 = vmul.f32 %v638, %v505
        %v640 = vmul.f32 %v639, %v638
        %v641 = vmul.f32 0.5, %v640
        %v642 = vsub.f32 1.5, %v641
        %v643 = vmul.f32 %v638, %v642
        %vm644 = vweird.f32 %v505
        %vm645 = vweird.f32 %v638
        %vm646 = vmor %vm644, %vm645
        %v647 = vsel %vm646, %v638, %v643
        %v648 = vrsqrt.pop %v506
        %v649 = vmul.f32 %v648, %v506
        %v650 = vmul.f32 %v649, %v648
        %v651 = vmul.f32 0.5, %v650
        %v652 = vsub.f32 1.5, %v651
        %v653 = vmul.f32 %v648, %v652
        %vm654 = vweird.f32 %v506
        %vm655 = vweird.f32 %v648
        %vm656 = vmor %vm654, %vm655
        %v657 = vsel %vm656, %v648, %v653
        %v658 = vrsqrt.pop %v507
        %v659 = vmul.f32 %v658, %v507
        %v660 = vmul.f32 %v659, %v658
        %v661 = vmul.f32 0.5, %v660
        %v662 = vsub.f32 1.5, %v661
        %v663 = vmul.f32 %v658, %v662
        %vm664 = vweird.f32 %v507
        %vm665 = vweird.f32 %v658
        %vm666 = vmor %vm664, %vm665
        %v667 = vsel %vm666, %v658, %v663
        %v668 = vmul.f32 %v357, %v517
        %v669 = vmul.f32 %v358, %v517
        %v670 = vmul.f32 %v359, %v527
        %v671 = vmul.f32 %v360, %v527
        %v672 = vmul.f32 %v361, %v537
        %v673 = vmul.f32 %v362, %v537
        %v674 = vmul.f32 %v363, %v547
        %v675 = vmul.f32 %v364, %v547
        %v676 = vmul.f32 %v365, %v557
        %v677 = vmul.f32 %v366, %v557
        %v678 = vmul.f32 %v367, %v567
        %v679 = vmul.f32 %v368, %v567
        %v680 = vmul.f32 %v369, %v577
        %v681 = vmul.f32 %v370, %v577
        %v682 = vmul.f32 %v371, %v587
        %v683 = vmul.f32 %v372, %v587
        %v684 = vmul.f32 %v373, %v597
        %v685 = vmul.f32 %v374, %v597
        %v686 = vmul.f32 %v375, %v607
        %v687 = vmul.f32 %v376, %v607
        %v688 = vmul.f32 %v377, %v617
        %v689 = vmul.f32 %v378, %v617
        %v690 = vmul.f32 %v379, %v627
        %v691 = vmul.f32 %v380, %v627
        %v692 = vmul.f32 %v381, %v637
        %v693 = vmul.f32 %v382, %v637
        %v694 = vmul.f32 %v383, %v647
        %v695 = vmul.f32 %v384, %v647
        %v696 = vmul.f32 %v385, %v657
        %v697 = vmul.f32 %v386, %v657
        %v698 = vmul.f32 %v387, %v667
        %v699 = vmul.f32 %v388, %v667
        %v701 = vperm.slane %v356, 0
        %v702 = vperm.slane %v356, 1
        %v705 = vmul.f32 %v668, %v701
        %v706 = vmul.f32 %v669, %v702
        %v707 = vmul.f32 %v670, %v701
        %v708 = vmul.f32 %v671, %v702
        %v709 = vmul.f32 %v672, %v701
        %v710 = vmul.f32 %v673, %v702
        %v711 = vmul.f32 %v674, %v701
        %v712 = vmul.f32 %v675, %v702
        %v713 = vmul.f32 %v676, %v701
        %v714 = vmul.f32 %v677, %v702
        %v715 = vmul.f32 %v678, %v701
        %v716 = vmul.f32 %v679, %v702
        %v717 = vmul.f32 %v680, %v701
        %v718 = vmul.f32 %v681, %v702
        %v719 = vmul.f32 %v682, %v701
        %v720 = vmul.f32 %v683, %v702
        %v721 = vmul.f32 %v684, %v701
        %v722 = vmul.f32 %v685, %v702
        %v723 = vmul.f32 %v686, %v701
        %v724 = vmul.f32 %v687, %v702
        %v725 = vmul.f32 %v688, %v701
        %v726 = vmul.f32 %v689, %v702
        %v727 = vmul.f32 %v690, %v701
        %v728 = vmul.f32 %v691, %v702
        %v729 = vmul.f32 %v692, %v701
        %v730 = vmul.f32 %v693, %v702
        %v731 = vmul.f32 %v694, %v701
        %v732 = vmul.f32 %v695, %v702
        %v733 = vmul.f32 %v696, %v701
        %v734 = vmul.f32 %v697, %v702
        %v735 = vmul.f32 %v698, %v701
        %v736 = vmul.f32 %v699, %v702
        %v737 = vpack.c.bf16 %v707, %v705
        %v738 = vpack.c.bf16 %v708, %v706
        %v739 = vpack.c.bf16 %v711, %v709
        %v740 = vpack.c.bf16 %v712, %v710
        %v741 = vpack.c.bf16 %v715, %v713
        %v742 = vpack.c.bf16 %v716, %v714
        %v743 = vpack.c.bf16 %v719, %v717
        %v744 = vpack.c.bf16 %v720, %v718
        %v745 = vpack.c.bf16 %v723, %v721
        %v746 = vpack.c.bf16 %v724, %v722
        %v747 = vpack.c.bf16 %v727, %v725
        %v748 = vpack.c.bf16 %v728, %v726
        %v749 = vpack.c.bf16 %v731, %v729
        %v750 = vpack.c.bf16 %v732, %v730
        %v751 = vpack.c.bf16 %v735, %v733
        %v752 = vpack.c.bf16 %v736, %v734
        %v753 = vld [vmem:[%s290] sm:$0xff]
        %v754 = vld [vmem:[%s290 + $0x8] sm:$0xff]
        %v755 = vld [vmem:[%s290 + $0x10] sm:$0xff]
        %v756 = vld [vmem:[%s290 + $0x18] sm:$0xff]
        %v757 = vld [vmem:[%s290 + $0x20] sm:$0xff]
        %v758 = vld [vmem:[%s290 + $0x28] sm:$0xff]
        %v759 = vld [vmem:[%s290 + $0x30] sm:$0xff]
        %v760 = vld [vmem:[%s290 + $0x38] sm:$0xff]
        %v761 = vld [vmem:[%s290 + $0x40] sm:$0xff]
        %v762 = vld [vmem:[%s290 + $0x48] sm:$0xff]
        %v763 = vld [vmem:[%s290 + $0x50] sm:$0xff]
        %v764 = vld [vmem:[%s290 + $0x58] sm:$0xff]
        %v765 = vld [vmem:[%s290 + $0x60] sm:$0xff]
        %v766 = vld [vmem:[%s290 + $0x68] sm:$0xff]
        %v767 = vld [vmem:[%s290 + $0x70] sm:$0xff]
        %v768 = vld [vmem:[%s290 + $0x78] sm:$0xff]
        %v769 = vld [vmem:[%s290 + $0x80] sm:$0xff]
        %v770 = vld [vmem:[%s290 + $0x88] sm:$0xff]
        %v771 = vld [vmem:[%s290 + $0x90] sm:$0xff]
        %v772 = vld [vmem:[%s290 + $0x98] sm:$0xff]
        %v773 = vld [vmem:[%s290 + $0xa0] sm:$0xff]
        %v774 = vld [vmem:[%s290 + $0xa8] sm:$0xff]
        %v775 = vld [vmem:[%s290 + $0xb0] sm:$0xff]
        %v776 = vld [vmem:[%s290 + $0xb8] sm:$0xff]
        %v777 = vld [vmem:[%s290 + $0xc0] sm:$0xff]
        %v778 = vld [vmem:[%s290 + $0xc8] sm:$0xff]
        %v779 = vld [vmem:[%s290 + $0xd0] sm:$0xff]
        %v780 = vld [vmem:[%s290 + $0xd8] sm:$0xff]
        %v781 = vld [vmem:[%s290 + $0xe0] sm:$0xff]
        %v782 = vld [vmem:[%s290 + $0xe8] sm:$0xff]
        %v783 = vld [vmem:[%s290 + $0xf0] sm:$0xff]
        %v784 = vld [vmem:[%s290 + $0xf8] sm:$0xff]
        %v785 = vld [vmem:[%s300] sm:$0x3]
        %v787 = vperm.slane %v785, 0
        %v788 = vperm.slane %v785, 1
        %v823 = vunpack.c.l.b16 %v753
        %v824 = vunpack.c.h.b16 %v753
        %v825 = vunpack.c.l.b16 %v754
        %v826 = vunpack.c.h.b16 %v754
        %v827 = vunpack.c.l.b16 %v755
        %v828 = vunpack.c.h.b16 %v755
        %v829 = vunpack.c.l.b16 %v756
        %v830 = vunpack.c.h.b16 %v756
        %v831 = vunpack.c.l.b16 %v757
        %v832 = vunpack.c.h.b16 %v757
        %v833 = vunpack.c.l.b16 %v758
        %v834 = vunpack.c.h.b16 %v758
        %v835 = vunpack.c.l.b16 %v759
        %v836 = vunpack.c.h.b16 %v759
        %v837 = vunpack.c.l.b16 %v760
        %v838 = vunpack.c.h.b16 %v760
        %v839 = vunpack.c.l.b16 %v761
        %v840 = vunpack.c.h.b16 %v761
        %v841 = vunpack.c.l.b16 %v762
        %v842 = vunpack.c.h.b16 %v762
        %v843 = vunpack.c.l.b16 %v763
        %v844 = vunpack.c.h.b16 %v763
        %v845 = vunpack.c.l.b16 %v764
        %v846 = vunpack.c.h.b16 %v764
        %v847 = vunpack.c.l.b16 %v765
        %v848 = vunpack.c.h.b16 %v765
        %v849 = vunpack.c.l.b16 %v766
        %v850 = vunpack.c.h.b16 %v766
        %v851 = vunpack.c.l.b16 %v767
        %v852 = vunpack.c.h.b16 %v767
        %v853 = vunpack.c.l.b16 %v768
        %v854 = vunpack.c.h.b16 %v768
        %v855 = vunpack.c.l.b16 %v769
        %v856 = vunpack.c.h.b16 %v769
        %v857 = vunpack.c.l.b16 %v770
        %v858 = vunpack.c.h.b16 %v770
        %v859 = vunpack.c.l.b16 %v771
        %v860 = vunpack.c.h.b16 %v771
        %v861 = vunpack.c.l.b16 %v772
        %v862 = vunpack.c.h.b16 %v772
        %v863 = vunpack.c.l.b16 %v773
        %v864 = vunpack.c.h.b16 %v773
        %v865 = vunpack.c.l.b16 %v774
        %v866 = vunpack.c.h.b16 %v774
        %v867 = vunpack.c.l.b16 %v775
        %v868 = vunpack.c.h.b16 %v775
        %v869 = vunpack.c.l.b16 %v776
        %v870 = vunpack.c.h.b16 %v776
        %v871 = vunpack.c.l.b16 %v777
        %v872 = vunpack.c.h.b16 %v777
        %v873 = vunpack.c.l.b16 %v778
        %v874 = vunpack.c.h.b16 %v778
        %v875 = vunpack.c.l.b16 %v779
        %v876 = vunpack.c.h.b16 %v779
        %v877 = vunpack.c.l.b16 %v780
        %v878 = vunpack.c.h.b16 %v780
        %v879 = vunpack.c.l.b16 %v781
        %v880 = vunpack.c.h.b16 %v781
        %v881 = vunpack.c.l.b16 %v782
        %v882 = vunpack.c.h.b16 %v782
        %v883 = vunpack.c.l.b16 %v783
        %v884 = vunpack.c.h.b16 %v783
        %v885 = vunpack.c.l.b16 %v784
        %v886 = vunpack.c.h.b16 %v784
        %v887 = vpack.c.b16 %v825, %v823
        %v888 = vpack.c.b16 %v826, %v824
        %v889 = vpack.c.b16 %v829, %v827
        %v890 = vpack.c.b16 %v830, %v828
        %v891 = vpack.c.b16 %v833, %v831
        %v892 = vpack.c.b16 %v834, %v832
        %v893 = vpack.c.b16 %v837, %v835
        %v894 = vpack.c.b16 %v838, %v836
        %v895 = vpack.c.b16 %v841, %v839
        %v896 = vpack.c.b16 %v842, %v840
        %v897 = vpack.c.b16 %v845, %v843
        %v898 = vpack.c.b16 %v846, %v844
        %v899 = vpack.c.b16 %v849, %v847
        %v900 = vpack.c.b16 %v850, %v848
        %v901 = vpack.c.b16 %v853, %v851
        %v902 = vpack.c.b16 %v854, %v852
        %v903 = vpack.c.b16 %v857, %v855
        %v904 = vpack.c.b16 %v858, %v856
        %v905 = vpack.c.b16 %v861, %v859
        %v906 = vpack.c.b16 %v862, %v860
        %v907 = vpack.c.b16 %v865, %v863
        %v908 = vpack.c.b16 %v866, %v864
        %v909 = vpack.c.b16 %v869, %v867
        %v910 = vpack.c.b16 %v870, %v868
        %v911 = vpack.c.b16 %v873, %v871
        %v912 = vpack.c.b16 %v874, %v872
        %v913 = vpack.c.b16 %v877, %v875
        %v914 = vpack.c.b16 %v878, %v876
        %v915 = vpack.c.b16 %v881, %v879
        %v916 = vpack.c.b16 %v882, %v880
        %v917 = vpack.c.b16 %v885, %v883
        %v918 = vpack.c.b16 %v886, %v884
        %951 = vmatpush.bf16.msra.mxu0 %v901
        %952 = vmatpush.bf16.msra.mxu0 %v899
        %953 = vmatpush.bf16.msra.mxu0 %v897
        %954 = vmatpush.bf16.msra.mxu0 %v895
        %955 = vmatpush.bf16.msra.mxu0 %v893
        %956 = vmatpush.bf16.msra.mxu0 %v891
        %957 = vmatpush.bf16.msra.mxu0 %v889
        %958 = vmatpush.bf16.msra.mxu0 %v887
        %959 = vmatmul.bf16.gmra.mxu0 %v737
        %v960 = vpop.f32.mrf.mxu0
        %v961 = vadd.f32 %v787, %v960
        %v962 = vpop.f32.mrf.mxu0
        %v963 = vadd.f32 %v787, %v962
        %964 = vmatmul.bf16.gmra.mxu0 %v739
        %v965 = vpop.f32.mrf.mxu0
        %v966 = vadd.f32 %v787, %v965
        %v967 = vpop.f32.mrf.mxu0
        %v968 = vadd.f32 %v787, %v967
        %969 = vmatmul.bf16.gmra.mxu0 %v741
        %v970 = vpop.f32.mrf.mxu0
        %v971 = vadd.f32 %v787, %v970
        %v972 = vpop.f32.mrf.mxu0
        %v973 = vadd.f32 %v787, %v972
        %974 = vmatmul.bf16.gmra.mxu0 %v743
        %v975 = vpop.f32.mrf.mxu0
        %v976 = vadd.f32 %v787, %v975
        %v977 = vpop.f32.mrf.mxu0
        %v978 = vadd.f32 %v787, %v977
        %979 = vmatmul.bf16.gmra.mxu0 %v745
        %v980 = vpop.f32.mrf.mxu0
        %v981 = vadd.f32 %v787, %v980
        %v982 = vpop.f32.mrf.mxu0
        %v983 = vadd.f32 %v787, %v982
        %984 = vmatmul.bf16.gmra.mxu0 %v747
        %v985 = vpop.f32.mrf.mxu0
        %v986 = vadd.f32 %v787, %v985
        %v987 = vpop.f32.mrf.mxu0
        %v988 = vadd.f32 %v787, %v987
        %989 = vmatmul.bf16.gmra.mxu0 %v749
        %v990 = vpop.f32.mrf.mxu0
        %v991 = vadd.f32 %v787, %v990
        %v992 = vpop.f32.mrf.mxu0
        %v993 = vadd.f32 %v787, %v992
        %994 = vmatmul.bf16.gmra.mxu0 %v751
        %v995 = vpop.f32.mrf.mxu0
        %v996 = vadd.f32 %v787, %v995
        %v997 = vpop.f32.mrf.mxu0
        %v998 = vadd.f32 %v787, %v997
        %999 = vdwg.mxu0
        %1000 = vmatpush.bf16.msra.mxu0 %v917
        %1001 = vmatpush.bf16.msra.mxu0 %v915
        %1002 = vmatpush.bf16.msra.mxu0 %v913
        %1003 = vmatpush.bf16.msra.mxu0 %v911
        %1004 = vmatpush.bf16.msra.mxu0 %v909
        %1005 = vmatpush.bf16.msra.mxu0 %v907
        %1006 = vmatpush.bf16.msra.mxu0 %v905
        %1007 = vmatpush.bf16.msra.mxu0 %v903
        %1008 = vmatmul.bf16.gmra.mxu0 %v738
        %v1009 = vpop.f32.mrf.mxu0
        %v1010 = vadd.f32 %v961, %v1009
        %v1011 = vpop.f32.mrf.mxu0
        %v1012 = vadd.f32 %v963, %v1011
        %1013 = vmatmul.bf16.gmra.mxu0 %v740
        %v1014 = vpop.f32.mrf.mxu0
        %v1015 = vadd.f32 %v966, %v1014
        %v1016 = vpop.f32.mrf.mxu0
        %v1017 = vadd.f32 %v968, %v1016
        %1018 = vmatmul.bf16.gmra.mxu0 %v742
        %v1019 = vpop.f32.mrf.mxu0
        %v1020 = vadd.f32 %v971, %v1019
        %v1021 = vpop.f32.mrf.mxu0
        %v1022 = vadd.f32 %v973, %v1021
        %1023 = vmatmul.bf16.gmra.mxu0 %v744
        %v1024 = vpop.f32.mrf.mxu0
        %v1025 = vadd.f32 %v976, %v1024
        %v1026 = vpop.f32.mrf.mxu0
        %v1027 = vadd.f32 %v978, %v1026
        %1028 = vmatmul.bf16.gmra.mxu0 %v746
        %v1029 = vpop.f32.mrf.mxu0
        %v1030 = vadd.f32 %v981, %v1029
        %v1031 = vpop.f32.mrf.mxu0
        %v1032 = vadd.f32 %v983, %v1031
        %1033 = vmatmul.bf16.gmra.mxu0 %v748
        %v1034 = vpop.f32.mrf.mxu0
        %v1035 = vadd.f32 %v986, %v1034
        %v1036 = vpop.f32.mrf.mxu0
        %v1037 = vadd.f32 %v988, %v1036
        %1038 = vmatmul.bf16.gmra.mxu0 %v750
        %v1039 = vpop.f32.mrf.mxu0
        %v1040 = vadd.f32 %v991, %v1039
        %v1041 = vpop.f32.mrf.mxu0
        %v1042 = vadd.f32 %v993, %v1041
        %1043 = vmatmul.bf16.gmra.mxu0 %v752
        %v1044 = vpop.f32.mrf.mxu0
        %v1045 = vadd.f32 %v996, %v1044
        %v1046 = vpop.f32.mrf.mxu0
        %v1047 = vadd.f32 %v998, %v1046
        %1048 = vdwg.mxu0
        %1049 = vmatpush.bf16.msra.mxu0 %v902
        %1050 = vmatpush.bf16.msra.mxu0 %v900
        %1051 = vmatpush.bf16.msra.mxu0 %v898
        %1052 = vmatpush.bf16.msra.mxu0 %v896
        %1053 = vmatpush.bf16.msra.mxu0 %v894
        %1054 = vmatpush.bf16.msra.mxu0 %v892
        %1055 = vmatpush.bf16.msra.mxu0 %v890
        %1056 = vmatpush.bf16.msra.mxu0 %v888
        %1057 = vmatmul.bf16.gmra.mxu0 %v737
        %v1058 = vpop.f32.mrf.mxu0
        %v1059 = vadd.f32 %v788, %v1058
        %v1060 = vpop.f32.mrf.mxu0
        %v1061 = vadd.f32 %v788, %v1060
        %1062 = vmatmul.bf16.gmra.mxu0 %v739
        %v1063 = vpop.f32.mrf.mxu0
        %v1064 = vadd.f32 %v788, %v1063
        %v1065 = vpop.f32.mrf.mxu0
        %v1066 = vadd.f32 %v788, %v1065
        %1067 = vmatmul.bf16.gmra.mxu0 %v741
        %v1068 = vpop.f32.mrf.mxu0
        %v1069 = vadd.f32 %v788, %v1068
        %v1070 = vpop.f32.mrf.mxu0
        %v1071 = vadd.f32 %v788, %v1070
        %1072 = vmatmul.bf16.gmra.mxu0 %v743
        %v1073 = vpop.f32.mrf.mxu0
        %v1074 = vadd.f32 %v788, %v1073
        %v1075 = vpop.f32.mrf.mxu0
        %v1076 = vadd.f32 %v788, %v1075
        %1077 = vmatmul.bf16.gmra.mxu0 %v745
        %v1078 = vpop.f32.mrf.mxu0
        %v1079 = vadd.f32 %v788, %v1078
        %v1080 = vpop.f32.mrf.mxu0
        %v1081 = vadd.f32 %v788, %v1080
        %1082 = vmatmul.bf16.gmra.mxu0 %v747
        %v1083 = vpop.f32.mrf.mxu0
        %v1084 = vadd.f32 %v788, %v1083
        %v1085 = vpop.f32.mrf.mxu0
        %v1086 = vadd.f32 %v788, %v1085
        %1087 = vmatmul.bf16.gmra.mxu0 %v749
        %v1088 = vpop.f32.mrf.mxu0
        %v1089 = vadd.f32 %v788, %v1088
        %v1090 = vpop.f32.mrf.mxu0
        %v1091 = vadd.f32 %v788, %v1090
        %1092 = vmatmul.bf16.gmra.mxu0 %v751
        %v1093 = vpop.f32.mrf.mxu0
        %v1094 = vadd.f32 %v788, %v1093
        %v1095 = vpop.f32.mrf.mxu0
        %v1096 = vadd.f32 %v788, %v1095
        %1097 = vdwg.mxu0
        %1098 = vmatpush.bf16.msra.mxu0 %v918
        %1099 = vmatpush.bf16.msra.mxu0 %v916
        %1100 = vmatpush.bf16.msra.mxu0 %v914
        %1101 = vmatpush.bf16.msra.mxu0 %v912
        %1102 = vmatpush.bf16.msra.mxu0 %v910
        %1103 = vmatpush.bf16.msra.mxu0 %v908
        %1104 = vmatpush.bf16.msra.mxu0 %v906
        %1105 = vmatpush.bf16.msra.mxu0 %v904
        %1106 = vmatmul.bf16.gmra.mxu0 %v738
        %v1107 = vpop.f32.mrf.mxu0
        %v1108 = vadd.f32 %v1059, %v1107
        %v1109 = vpop.f32.mrf.mxu0
        %v1110 = vadd.f32 %v1061, %v1109
        %1111 = vmatmul.bf16.gmra.mxu0 %v740
        %v1112 = vpop.f32.mrf.mxu0
        %v1113 = vadd.f32 %v1064, %v1112
        %v1114 = vpop.f32.mrf.mxu0
        %v1115 = vadd.f32 %v1066, %v1114
        %1116 = vmatmul.bf16.gmra.mxu0 %v742
        %v1117 = vpop.f32.mrf.mxu0
        %v1118 = vadd.f32 %v1069, %v1117
        %v1119 = vpop.f32.mrf.mxu0
        %v1120 = vadd.f32 %v1071, %v1119
        %1121 = vmatmul.bf16.gmra.mxu0 %v744
        %v1122 = vpop.f32.mrf.mxu0
        %v1123 = vadd.f32 %v1074, %v1122
        %v1124 = vpop.f32.mrf.mxu0
        %v1125 = vadd.f32 %v1076, %v1124
        %1126 = vmatmul.bf16.gmra.mxu0 %v746
        %v1127 = vpop.f32.mrf.mxu0
        %v1128 = vadd.f32 %v1079, %v1127
        %v1129 = vpop.f32.mrf.mxu0
        %v1130 = vadd.f32 %v1081, %v1129
        %1131 = vmatmul.bf16.gmra.mxu0 %v748
        %v1132 = vpop.f32.mrf.mxu0
        %v1133 = vadd.f32 %v1084, %v1132
        %v1134 = vpop.f32.mrf.mxu0
        %v1135 = vadd.f32 %v1086, %v1134
        %1136 = vmatmul.bf16.gmra.mxu0 %v750
        %v1137 = vpop.f32.mrf.mxu0
        %v1138 = vadd.f32 %v1089, %v1137
        %v1139 = vpop.f32.mrf.mxu0
        %v1140 = vadd.f32 %v1091, %v1139
        %1141 = vmatmul.bf16.gmra.mxu0 %v752
        %v1142 = vpop.f32.mrf.mxu0
        %v1143 = vadd.f32 %v1094, %v1142
        %v1144 = vpop.f32.mrf.mxu0
        %v1145 = vadd.f32 %v1096, %v1144
        %1146 = vdwg.mxu0
        %p1147 = scmp.eq.s32.totalorder %s27, 0
        %s1148 = scalar_select %p1147, 0.088388346, 1.0
        %v1149 = vstv %s1148
        %v1150 = vmul.f32 %v1010, %v1149
        %v1151 = vmul.f32 %v1108, %v1149
        %v1152 = vmul.f32 %v1012, %v1149
        %v1153 = vmul.f32 %v1110, %v1149
        %v1154 = vmul.f32 %v1015, %v1149
        %v1155 = vmul.f32 %v1113, %v1149
        %v1156 = vmul.f32 %v1017, %v1149
        %v1157 = vmul.f32 %v1115, %v1149
        %v1158 = vmul.f32 %v1020, %v1149
        %v1159 = vmul.f32 %v1118, %v1149
        %v1160 = vmul.f32 %v1022, %v1149
        %v1161 = vmul.f32 %v1120, %v1149
        %v1162 = vmul.f32 %v1025, %v1149
        %v1163 = vmul.f32 %v1123, %v1149
        %v1164 = vmul.f32 %v1027, %v1149
        %v1165 = vmul.f32 %v1125, %v1149
        %v1166 = vmul.f32 %v1030, %v1149
        %v1167 = vmul.f32 %v1128, %v1149
        %v1168 = vmul.f32 %v1032, %v1149
        %v1169 = vmul.f32 %v1130, %v1149
        %v1170 = vmul.f32 %v1035, %v1149
        %v1171 = vmul.f32 %v1133, %v1149
        %v1172 = vmul.f32 %v1037, %v1149
        %v1173 = vmul.f32 %v1135, %v1149
        %v1174 = vmul.f32 %v1040, %v1149
        %v1175 = vmul.f32 %v1138, %v1149
        %v1176 = vmul.f32 %v1042, %v1149
        %v1177 = vmul.f32 %v1140, %v1149
        %v1178 = vmul.f32 %v1045, %v1149
        %v1179 = vmul.f32 %v1143, %v1149
        %v1180 = vmul.f32 %v1047, %v1149
        %v1181 = vmul.f32 %v1145, %v1149
        %v1182 = vrot.slane %v1150, 4
        %vm1183 = vcmask 1047556
        %v1184 = vsel %vm1183, 0.0, %v1182
        %v1186 = vunpack.c.l.s4 1983009808
        %v1187 = vunpack.c.0.s8 %v1186
        %v1188 = vperm.slane %v1150, %v1187
        %v1190 = vunpack.c.l.s4 1983009808
        %v1191 = vunpack.c.0.s8 %v1190
        %v1192 = vperm.slane %v1184, %v1191
        %v1193 = vrot.slane %v1151, 4
        %v1194 = vsel %vm1183, 0.0, %v1193
        %v1196 = vunpack.c.l.s4 1983009808
        %v1197 = vunpack.c.0.s8 %v1196
        %v1198 = vperm.slane %v1151, %v1197
        %v1200 = vunpack.c.l.s4 1983009808
        %v1201 = vunpack.c.0.s8 %v1200
        %v1202 = vperm.slane %v1194, %v1201
        %v1203 = vrot.slane %v1198, 4
        %v1204 = vsel %vm1183, %v1203, %v1188
        %v1205 = vrot.slane %v1188, 4
        %v1206 = vsel %vm1183, %v1198, %v1205
        %v1208 = vunpack.c.l.s4 1934713408
        %v1209 = vunpack.c.0.s8 %v1208
        %v1210 = vperm.slane %v1204, %v1209
        %v1212 = vunpack.c.l.s4 1934713408
        %v1213 = vunpack.c.0.s8 %v1212
        %v1214 = vperm.slane %v1206, %v1213
        %v1215 = vrot.slane %v1202, 4
        %v1216 = vsel %vm1183, %v1215, %v1192
        %v1217 = vrot.slane %v1192, 4
        %v1218 = vsel %vm1183, %v1202, %v1217
        %v1220 = vunpack.c.l.s4 1934713408
        %v1221 = vunpack.c.0.s8 %v1220
        %v1222 = vperm.slane %v1216, %v1221
        %v1224 = vunpack.c.l.s4 1934713408
        %v1225 = vunpack.c.0.s8 %v1224
        %v1226 = vperm.slane %v1218, %v1225
        %v1227 = vrot.slane %v1210, 4
        %v1228 = vsel %vm1183, 0.0, %v1227
        %v1229 = vrot.slane %v1214, 4
        %v1230 = vsel %vm1183, 0.0, %v1229
        %v1231 = vrot.slane %v1222, 4
        %v1232 = vsel %vm1183, 0.0, %v1231
        %v1233 = vrot.slane %v1226, 4
        %v1234 = vsel %vm1183, 0.0, %v1233
        %v1235 = vrot.slane %v1152, 4
        %v1236 = vsel %vm1183, 0.0, %v1235
        %v1238 = vunpack.c.l.s4 1983009808
        %v1239 = vunpack.c.0.s8 %v1238
        %v1240 = vperm.slane %v1152, %v1239
        %v1242 = vunpack.c.l.s4 1983009808
        %v1243 = vunpack.c.0.s8 %v1242
        %v1244 = vperm.slane %v1236, %v1243
        %v1245 = vrot.slane %v1153, 4
        %v1246 = vsel %vm1183, 0.0, %v1245
        %v1248 = vunpack.c.l.s4 1983009808
        %v1249 = vunpack.c.0.s8 %v1248
        %v1250 = vperm.slane %v1153, %v1249
        %v1252 = vunpack.c.l.s4 1983009808
        %v1253 = vunpack.c.0.s8 %v1252
        %v1254 = vperm.slane %v1246, %v1253
        %v1255 = vrot.slane %v1250, 4
        %v1256 = vsel %vm1183, %v1255, %v1240
        %v1257 = vrot.slane %v1240, 4
        %v1258 = vsel %vm1183, %v1250, %v1257
        %v1260 = vunpack.c.l.s4 1934713408
        %v1261 = vunpack.c.0.s8 %v1260
        %v1262 = vperm.slane %v1256, %v1261
        %v1264 = vunpack.c.l.s4 1934713408
        %v1265 = vunpack.c.0.s8 %v1264
        %v1266 = vperm.slane %v1258, %v1265
        %v1267 = vrot.slane %v1254, 4
        %v1268 = vsel %vm1183, %v1267, %v1244
        %v1269 = vrot.slane %v1244, 4
        %v1270 = vsel %vm1183, %v1254, %v1269
        %v1272 = vunpack.c.l.s4 1934713408
        %v1273 = vunpack.c.0.s8 %v1272
        %v1274 = vperm.slane %v1268, %v1273
        %v1276 = vunpack.c.l.s4 1934713408
        %v1277 = vunpack.c.0.s8 %v1276
        %v1278 = vperm.slane %v1270, %v1277
        %v1279 = vrot.slane %v1262, 4
        %v1280 = vsel %vm1183, 0.0, %v1279
        %v1281 = vrot.slane %v1266, 4
        %v1282 = vsel %vm1183, 0.0, %v1281
        %v1283 = vrot.slane %v1274, 4
        %v1284 = vsel %vm1183, 0.0, %v1283
        %v1285 = vrot.slane %v1278, 4
        %v1286 = vsel %vm1183, 0.0, %v1285
        %v1287 = vrot.slane %v1154, 4
        %v1288 = vsel %vm1183, 0.0, %v1287
        %v1290 = vunpack.c.l.s4 1983009808
        %v1291 = vunpack.c.0.s8 %v1290
        %v1292 = vperm.slane %v1154, %v1291
        %v1294 = vunpack.c.l.s4 1983009808
        %v1295 = vunpack.c.0.s8 %v1294
        %v1296 = vperm.slane %v1288, %v1295
        %v1297 = vrot.slane %v1155, 4
        %v1298 = vsel %vm1183, 0.0, %v1297
        %v1300 = vunpack.c.l.s4 1983009808
        %v1301 = vunpack.c.0.s8 %v1300
        %v1302 = vperm.slane %v1155, %v1301
        %v1304 = vunpack.c.l.s4 1983009808
        %v1305 = vunpack.c.0.s8 %v1304
        %v1306 = vperm.slane %v1298, %v1305
        %v1307 = vrot.slane %v1302, 4
        %v1308 = vsel %vm1183, %v1307, %v1292
        %v1309 = vrot.slane %v1292, 4
        %v1310 = vsel %vm1183, %v1302, %v1309
        %v1312 = vunpack.c.l.s4 1934713408
        %v1313 = vunpack.c.0.s8 %v1312
        %v1314 = vperm.slane %v1308, %v1313
        %v1316 = vunpack.c.l.s4 1934713408
        %v1317 = vunpack.c.0.s8 %v1316
        %v1318 = vperm.slane %v1310, %v1317
        %v1319 = vrot.slane %v1306, 4
        %v1320 = vsel %vm1183, %v1319, %v1296
        %v1321 = vrot.slane %v1296, 4
        %v1322 = vsel %vm1183, %v1306, %v1321
        %v1324 = vunpack.c.l.s4 1934713408
        %v1325 = vunpack.c.0.s8 %v1324
        %v1326 = vperm.slane %v1320, %v1325
        %v1328 = vunpack.c.l.s4 1934713408
        %v1329 = vunpack.c.0.s8 %v1328
        %v1330 = vperm.slane %v1322, %v1329
        %v1331 = vrot.slane %v1314, 4
        %v1332 = vsel %vm1183, 0.0, %v1331
        %v1333 = vrot.slane %v1318, 4
        %v1334 = vsel %vm1183, 0.0, %v1333
        %v1335 = vrot.slane %v1326, 4
        %v1336 = vsel %vm1183, 0.0, %v1335
        %v1337 = vrot.slane %v1330, 4
        %v1338 = vsel %vm1183, 0.0, %v1337
        %v1339 = vrot.slane %v1156, 4
        %v1340 = vsel %vm1183, 0.0, %v1339
        %v1342 = vunpack.c.l.s4 1983009808
        %v1343 = vunpack.c.0.s8 %v1342
        %v1344 = vperm.slane %v1156, %v1343
        %v1346 = vunpack.c.l.s4 1983009808
        %v1347 = vunpack.c.0.s8 %v1346
        %v1348 = vperm.slane %v1340, %v1347
        %v1349 = vrot.slane %v1157, 4
        %v1350 = vsel %vm1183, 0.0, %v1349
        %v1352 = vunpack.c.l.s4 1983009808
        %v1353 = vunpack.c.0.s8 %v1352
        %v1354 = vperm.slane %v1157, %v1353
        %v1356 = vunpack.c.l.s4 1983009808
        %v1357 = vunpack.c.0.s8 %v1356
        %v1358 = vperm.slane %v1350, %v1357
        %v1359 = vrot.slane %v1354, 4
        %v1360 = vsel %vm1183, %v1359, %v1344
        %v1361 = vrot.slane %v1344, 4
        %v1362 = vsel %vm1183, %v1354, %v1361
        %v1364 = vunpack.c.l.s4 1934713408
        %v1365 = vunpack.c.0.s8 %v1364
        %v1366 = vperm.slane %v1360, %v1365
        %v1368 = vunpack.c.l.s4 1934713408
        %v1369 = vunpack.c.0.s8 %v1368
        %v1370 = vperm.slane %v1362, %v1369
        %v1371 = vrot.slane %v1358, 4
        %v1372 = vsel %vm1183, %v1371, %v1348
        %v1373 = vrot.slane %v1348, 4
        %v1374 = vsel %vm1183, %v1358, %v1373
        %v1376 = vunpack.c.l.s4 1934713408
        %v1377 = vunpack.c.0.s8 %v1376
        %v1378 = vperm.slane %v1372, %v1377
        %v1380 = vunpack.c.l.s4 1934713408
        %v1381 = vunpack.c.0.s8 %v1380
        %v1382 = vperm.slane %v1374, %v1381
        %v1383 = vrot.slane %v1366, 4
        %v1384 = vsel %vm1183, 0.0, %v1383
        %v1385 = vrot.slane %v1370, 4
        %v1386 = vsel %vm1183, 0.0, %v1385
        %v1387 = vrot.slane %v1378, 4
        %v1388 = vsel %vm1183, 0.0, %v1387
        %v1389 = vrot.slane %v1382, 4
        %v1390 = vsel %vm1183, 0.0, %v1389
        %v1391 = vrot.slane %v1158, 4
        %v1392 = vsel %vm1183, 0.0, %v1391
        %v1394 = vunpack.c.l.s4 1983009808
        %v1395 = vunpack.c.0.s8 %v1394
        %v1396 = vperm.slane %v1158, %v1395
        %v1398 = vunpack.c.l.s4 1983009808
        %v1399 = vunpack.c.0.s8 %v1398
        %v1400 = vperm.slane %v1392, %v1399
        %v1401 = vrot.slane %v1159, 4
        %v1402 = vsel %vm1183, 0.0, %v1401
        %v1404 = vunpack.c.l.s4 1983009808
        %v1405 = vunpack.c.0.s8 %v1404
        %v1406 = vperm.slane %v1159, %v1405
        %v1408 = vunpack.c.l.s4 1983009808
        %v1409 = vunpack.c.0.s8 %v1408
        %v1410 = vperm.slane %v1402, %v1409
        %v1411 = vrot.slane %v1406, 4
        %v1412 = vsel %vm1183, %v1411, %v1396
        %v1413 = vrot.slane %v1396, 4
        %v1414 = vsel %vm1183, %v1406, %v1413
        %v1416 = vunpack.c.l.s4 1934713408
        %v1417 = vunpack.c.0.s8 %v1416
        %v1418 = vperm.slane %v1412, %v1417
        %v1420 = vunpack.c.l.s4 1934713408
        %v1421 = vunpack.c.0.s8 %v1420
        %v1422 = vperm.slane %v1414, %v1421
        %v1423 = vrot.slane %v1410, 4
        %v1424 = vsel %vm1183, %v1423, %v1400
        %v1425 = vrot.slane %v1400, 4
        %v1426 = vsel %vm1183, %v1410, %v1425
        %v1428 = vunpack.c.l.s4 1934713408
        %v1429 = vunpack.c.0.s8 %v1428
        %v1430 = vperm.slane %v1424, %v1429
        %v1432 = vunpack.c.l.s4 1934713408
        %v1433 = vunpack.c.0.s8 %v1432
        %v1434 = vperm.slane %v1426, %v1433
        %v1435 = vrot.slane %v1418, 4
        %v1436 = vsel %vm1183, 0.0, %v1435
        %v1437 = vrot.slane %v1422, 4
        %v1438 = vsel %vm1183, 0.0, %v1437
        %v1439 = vrot.slane %v1430, 4
        %v1440 = vsel %vm1183, 0.0, %v1439
        %v1441 = vrot.slane %v1434, 4
        %v1442 = vsel %vm1183, 0.0, %v1441
        %v1443 = vrot.slane %v1160, 4
        %v1444 = vsel %vm1183, 0.0, %v1443
        %v1446 = vunpack.c.l.s4 1983009808
        %v1447 = vunpack.c.0.s8 %v1446
        %v1448 = vperm.slane %v1160, %v1447
        %v1450 = vunpack.c.l.s4 1983009808
        %v1451 = vunpack.c.0.s8 %v1450
        %v1452 = vperm.slane %v1444, %v1451
        %v1453 = vrot.slane %v1161, 4
        %v1454 = vsel %vm1183, 0.0, %v1453
        %v1456 = vunpack.c.l.s4 1983009808
        %v1457 = vunpack.c.0.s8 %v1456
        %v1458 = vperm.slane %v1161, %v1457
        %v1460 = vunpack.c.l.s4 1983009808
        %v1461 = vunpack.c.0.s8 %v1460
        %v1462 = vperm.slane %v1454, %v1461
        %v1463 = vrot.slane %v1458, 4
        %v1464 = vsel %vm1183, %v1463, %v1448
        %v1465 = vrot.slane %v1448, 4
        %v1466 = vsel %vm1183, %v1458, %v1465
        %v1468 = vunpack.c.l.s4 1934713408
        %v1469 = vunpack.c.0.s8 %v1468
        %v1470 = vperm.slane %v1464, %v1469
        %v1472 = vunpack.c.l.s4 1934713408
        %v1473 = vunpack.c.0.s8 %v1472
        %v1474 = vperm.slane %v1466, %v1473
        %v1475 = vrot.slane %v1462, 4
        %v1476 = vsel %vm1183, %v1475, %v1452
        %v1477 = vrot.slane %v1452, 4
        %v1478 = vsel %vm1183, %v1462, %v1477
        %v1480 = vunpack.c.l.s4 1934713408
        %v1481 = vunpack.c.0.s8 %v1480
        %v1482 = vperm.slane %v1476, %v1481
        %v1484 = vunpack.c.l.s4 1934713408
        %v1485 = vunpack.c.0.s8 %v1484
        %v1486 = vperm.slane %v1478, %v1485
        %v1487 = vrot.slane %v1470, 4
        %v1488 = vsel %vm1183, 0.0, %v1487
        %v1489 = vrot.slane %v1474, 4
        %v1490 = vsel %vm1183, 0.0, %v1489
        %v1491 = vrot.slane %v1482, 4
        %v1492 = vsel %vm1183, 0.0, %v1491
        %v1493 = vrot.slane %v1486, 4
        %v1494 = vsel %vm1183, 0.0, %v1493
        %v1495 = vrot.slane %v1162, 4
        %v1496 = vsel %vm1183, 0.0, %v1495
        %v1498 = vunpack.c.l.s4 1983009808
        %v1499 = vunpack.c.0.s8 %v1498
        %v1500 = vperm.slane %v1162, %v1499
        %v1502 = vunpack.c.l.s4 1983009808
        %v1503 = vunpack.c.0.s8 %v1502
        %v1504 = vperm.slane %v1496, %v1503
        %v1505 = vrot.slane %v1163, 4
        %v1506 = vsel %vm1183, 0.0, %v1505
        %v1508 = vunpack.c.l.s4 1983009808
        %v1509 = vunpack.c.0.s8 %v1508
        %v1510 = vperm.slane %v1163, %v1509
        %v1512 = vunpack.c.l.s4 1983009808
        %v1513 = vunpack.c.0.s8 %v1512
        %v1514 = vperm.slane %v1506, %v1513
        %v1515 = vrot.slane %v1510, 4
        %v1516 = vsel %vm1183, %v1515, %v1500
        %v1517 = vrot.slane %v1500, 4
        %v1518 = vsel %vm1183, %v1510, %v1517
        %v1520 = vunpack.c.l.s4 1934713408
        %v1521 = vunpack.c.0.s8 %v1520
        %v1522 = vperm.slane %v1516, %v1521
        %v1524 = vunpack.c.l.s4 1934713408
        %v1525 = vunpack.c.0.s8 %v1524
        %v1526 = vperm.slane %v1518, %v1525
        %v1527 = vrot.slane %v1514, 4
        %v1528 = vsel %vm1183, %v1527, %v1504
        %v1529 = vrot.slane %v1504, 4
        %v1530 = vsel %vm1183, %v1514, %v1529
        %v1532 = vunpack.c.l.s4 1934713408
        %v1533 = vunpack.c.0.s8 %v1532
        %v1534 = vperm.slane %v1528, %v1533
        %v1536 = vunpack.c.l.s4 1934713408
        %v1537 = vunpack.c.0.s8 %v1536
        %v1538 = vperm.slane %v1530, %v1537
        %v1539 = vrot.slane %v1522, 4
        %v1540 = vsel %vm1183, 0.0, %v1539
        %v1541 = vrot.slane %v1526, 4
        %v1542 = vsel %vm1183, 0.0, %v1541
        %v1543 = vrot.slane %v1534, 4
        %v1544 = vsel %vm1183, 0.0, %v1543
        %v1545 = vrot.slane %v1538, 4
        %v1546 = vsel %vm1183, 0.0, %v1545
        %v1547 = vrot.slane %v1164, 4
        %v1548 = vsel %vm1183, 0.0, %v1547
        %v1550 = vunpack.c.l.s4 1983009808
        %v1551 = vunpack.c.0.s8 %v1550
        %v1552 = vperm.slane %v1164, %v1551
        %v1554 = vunpack.c.l.s4 1983009808
        %v1555 = vunpack.c.0.s8 %v1554
        %v1556 = vperm.slane %v1548, %v1555
        %v1557 = vrot.slane %v1165, 4
        %v1558 = vsel %vm1183, 0.0, %v1557
        %v1560 = vunpack.c.l.s4 1983009808
        %v1561 = vunpack.c.0.s8 %v1560
        %v1562 = vperm.slane %v1165, %v1561
        %v1564 = vunpack.c.l.s4 1983009808
        %v1565 = vunpack.c.0.s8 %v1564
        %v1566 = vperm.slane %v1558, %v1565
        %v1567 = vrot.slane %v1562, 4
        %v1568 = vsel %vm1183, %v1567, %v1552
        %v1569 = vrot.slane %v1552, 4
        %v1570 = vsel %vm1183, %v1562, %v1569
        %v1572 = vunpack.c.l.s4 1934713408
        %v1573 = vunpack.c.0.s8 %v1572
        %v1574 = vperm.slane %v1568, %v1573
        %v1576 = vunpack.c.l.s4 1934713408
        %v1577 = vunpack.c.0.s8 %v1576
        %v1578 = vperm.slane %v1570, %v1577
        %v1579 = vrot.slane %v1566, 4
        %v1580 = vsel %vm1183, %v1579, %v1556
        %v1581 = vrot.slane %v1556, 4
        %v1582 = vsel %vm1183, %v1566, %v1581
        %v1584 = vunpack.c.l.s4 1934713408
        %v1585 = vunpack.c.0.s8 %v1584
        %v1586 = vperm.slane %v1580, %v1585
        %v1588 = vunpack.c.l.s4 1934713408
        %v1589 = vunpack.c.0.s8 %v1588
        %v1590 = vperm.slane %v1582, %v1589
        %v1591 = vrot.slane %v1574, 4
        %v1592 = vsel %vm1183, 0.0, %v1591
        %v1593 = vrot.slane %v1578, 4
        %v1594 = vsel %vm1183, 0.0, %v1593
        %v1595 = vrot.slane %v1586, 4
        %v1596 = vsel %vm1183, 0.0, %v1595
        %v1597 = vrot.slane %v1590, 4
        %v1598 = vsel %vm1183, 0.0, %v1597
        %v1599 = vrot.slane %v1166, 4
        %v1600 = vsel %vm1183, 0.0, %v1599
        %v1602 = vunpack.c.l.s4 1983009808
        %v1603 = vunpack.c.0.s8 %v1602
        %v1604 = vperm.slane %v1166, %v1603
        %v1606 = vunpack.c.l.s4 1983009808
        %v1607 = vunpack.c.0.s8 %v1606
        %v1608 = vperm.slane %v1600, %v1607
        %v1609 = vrot.slane %v1167, 4
        %v1610 = vsel %vm1183, 0.0, %v1609
        %v1612 = vunpack.c.l.s4 1983009808
        %v1613 = vunpack.c.0.s8 %v1612
        %v1614 = vperm.slane %v1167, %v1613
        %v1616 = vunpack.c.l.s4 1983009808
        %v1617 = vunpack.c.0.s8 %v1616
        %v1618 = vperm.slane %v1610, %v1617
        %v1619 = vrot.slane %v1614, 4
        %v1620 = vsel %vm1183, %v1619, %v1604
        %v1621 = vrot.slane %v1604, 4
        %v1622 = vsel %vm1183, %v1614, %v1621
        %v1624 = vunpack.c.l.s4 1934713408
        %v1625 = vunpack.c.0.s8 %v1624
        %v1626 = vperm.slane %v1620, %v1625
        %v1628 = vunpack.c.l.s4 1934713408
        %v1629 = vunpack.c.0.s8 %v1628
        %v1630 = vperm.slane %v1622, %v1629
        %v1631 = vrot.slane %v1618, 4
        %v1632 = vsel %vm1183, %v1631, %v1608
        %v1633 = vrot.slane %v1608, 4
        %v1634 = vsel %vm1183, %v1618, %v1633
        %v1636 = vunpack.c.l.s4 1934713408
        %v1637 = vunpack.c.0.s8 %v1636
        %v1638 = vperm.slane %v1632, %v1637
        %v1640 = vunpack.c.l.s4 1934713408
        %v1641 = vunpack.c.0.s8 %v1640
        %v1642 = vperm.slane %v1634, %v1641
        %v1643 = vrot.slane %v1626, 4
        %v1644 = vsel %vm1183, 0.0, %v1643
        %v1645 = vrot.slane %v1630, 4
        %v1646 = vsel %vm1183, 0.0, %v1645
        %v1647 = vrot.slane %v1638, 4
        %v1648 = vsel %vm1183, 0.0, %v1647
        %v1649 = vrot.slane %v1642, 4
        %v1650 = vsel %vm1183, 0.0, %v1649
        %v1651 = vrot.slane %v1168, 4
        %v1652 = vsel %vm1183, 0.0, %v1651
        %v1654 = vunpack.c.l.s4 1983009808
        %v1655 = vunpack.c.0.s8 %v1654
        %v1656 = vperm.slane %v1168, %v1655
        %v1658 = vunpack.c.l.s4 1983009808
        %v1659 = vunpack.c.0.s8 %v1658
        %v1660 = vperm.slane %v1652, %v1659
        %v1661 = vrot.slane %v1169, 4
        %v1662 = vsel %vm1183, 0.0, %v1661
        %v1664 = vunpack.c.l.s4 1983009808
        %v1665 = vunpack.c.0.s8 %v1664
        %v1666 = vperm.slane %v1169, %v1665
        %v1668 = vunpack.c.l.s4 1983009808
        %v1669 = vunpack.c.0.s8 %v1668
        %v1670 = vperm.slane %v1662, %v1669
        %v1671 = vrot.slane %v1666, 4
        %v1672 = vsel %vm1183, %v1671, %v1656
        %v1673 = vrot.slane %v1656, 4
        %v1674 = vsel %vm1183, %v1666, %v1673
        %v1676 = vunpack.c.l.s4 1934713408
        %v1677 = vunpack.c.0.s8 %v1676
        %v1678 = vperm.slane %v1672, %v1677
        %v1680 = vunpack.c.l.s4 1934713408
        %v1681 = vunpack.c.0.s8 %v1680
        %v1682 = vperm.slane %v1674, %v1681
        %v1683 = vrot.slane %v1670, 4
        %v1684 = vsel %vm1183, %v1683, %v1660
        %v1685 = vrot.slane %v1660, 4
        %v1686 = vsel %vm1183, %v1670, %v1685
        %v1688 = vunpack.c.l.s4 1934713408
        %v1689 = vunpack.c.0.s8 %v1688
        %v1690 = vperm.slane %v1684, %v1689
        %v1692 = vunpack.c.l.s4 1934713408
        %v1693 = vunpack.c.0.s8 %v1692
        %v1694 = vperm.slane %v1686, %v1693
        %v1695 = vrot.slane %v1678, 4
        %v1696 = vsel %vm1183, 0.0, %v1695
        %v1697 = vrot.slane %v1682, 4
        %v1698 = vsel %vm1183, 0.0, %v1697
        %v1699 = vrot.slane %v1690, 4
        %v1700 = vsel %vm1183, 0.0, %v1699
        %v1701 = vrot.slane %v1694, 4
        %v1702 = vsel %vm1183, 0.0, %v1701
        %v1703 = vrot.slane %v1170, 4
        %v1704 = vsel %vm1183, 0.0, %v1703
        %v1706 = vunpack.c.l.s4 1983009808
        %v1707 = vunpack.c.0.s8 %v1706
        %v1708 = vperm.slane %v1170, %v1707
        %v1710 = vunpack.c.l.s4 1983009808
        %v1711 = vunpack.c.0.s8 %v1710
        %v1712 = vperm.slane %v1704, %v1711
        %v1713 = vrot.slane %v1171, 4
        %v1714 = vsel %vm1183, 0.0, %v1713
        %v1716 = vunpack.c.l.s4 1983009808
        %v1717 = vunpack.c.0.s8 %v1716
        %v1718 = vperm.slane %v1171, %v1717
        %v1720 = vunpack.c.l.s4 1983009808
        %v1721 = vunpack.c.0.s8 %v1720
        %v1722 = vperm.slane %v1714, %v1721
        %v1723 = vrot.slane %v1718, 4
        %v1724 = vsel %vm1183, %v1723, %v1708
        %v1725 = vrot.slane %v1708, 4
        %v1726 = vsel %vm1183, %v1718, %v1725
        %v1728 = vunpack.c.l.s4 1934713408
        %v1729 = vunpack.c.0.s8 %v1728
        %v1730 = vperm.slane %v1724, %v1729
        %v1732 = vunpack.c.l.s4 1934713408
        %v1733 = vunpack.c.0.s8 %v1732
        %v1734 = vperm.slane %v1726, %v1733
        %v1735 = vrot.slane %v1722, 4
        %v1736 = vsel %vm1183, %v1735, %v1712
        %v1737 = vrot.slane %v1712, 4
        %v1738 = vsel %vm1183, %v1722, %v1737
        %v1740 = vunpack.c.l.s4 1934713408
        %v1741 = vunpack.c.0.s8 %v1740
        %v1742 = vperm.slane %v1736, %v1741
        %v1744 = vunpack.c.l.s4 1934713408
        %v1745 = vunpack.c.0.s8 %v1744
        %v1746 = vperm.slane %v1738, %v1745
        %v1747 = vrot.slane %v1730, 4
        %v1748 = vsel %vm1183, 0.0, %v1747
        %v1749 = vrot.slane %v1734, 4
        %v1750 = vsel %vm1183, 0.0, %v1749
        %v1751 = vrot.slane %v1742, 4
        %v1752 = vsel %vm1183, 0.0, %v1751
        %v1753 = vrot.slane %v1746, 4
        %v1754 = vsel %vm1183, 0.0, %v1753
        %v1755 = vrot.slane %v1172, 4
        %v1756 = vsel %vm1183, 0.0, %v1755
        %v1758 = vunpack.c.l.s4 1983009808
        %v1759 = vunpack.c.0.s8 %v1758
        %v1760 = vperm.slane %v1172, %v1759
        %v1762 = vunpack.c.l.s4 1983009808
        %v1763 = vunpack.c.0.s8 %v1762
        %v1764 = vperm.slane %v1756, %v1763
        %v1765 = vrot.slane %v1173, 4
        %v1766 = vsel %vm1183, 0.0, %v1765
        %v1768 = vunpack.c.l.s4 1983009808
        %v1769 = vunpack.c.0.s8 %v1768
        %v1770 = vperm.slane %v1173, %v1769
        %v1772 = vunpack.c.l.s4 1983009808
        %v1773 = vunpack.c.0.s8 %v1772
        %v1774 = vperm.slane %v1766, %v1773
        %v1775 = vrot.slane %v1770, 4
        %v1776 = vsel %vm1183, %v1775, %v1760
        %v1777 = vrot.slane %v1760, 4
        %v1778 = vsel %vm1183, %v1770, %v1777
        %v1780 = vunpack.c.l.s4 1934713408
        %v1781 = vunpack.c.0.s8 %v1780
        %v1782 = vperm.slane %v1776, %v1781
        %v1784 = vunpack.c.l.s4 1934713408
        %v1785 = vunpack.c.0.s8 %v1784
        %v1786 = vperm.slane %v1778, %v1785
        %v1787 = vrot.slane %v1774, 4
        %v1788 = vsel %vm1183, %v1787, %v1764
        %v1789 = vrot.slane %v1764, 4
        %v1790 = vsel %vm1183, %v1774, %v1789
        %v1792 = vunpack.c.l.s4 1934713408
        %v1793 = vunpack.c.0.s8 %v1792
        %v1794 = vperm.slane %v1788, %v1793
        %v1796 = vunpack.c.l.s4 1934713408
        %v1797 = vunpack.c.0.s8 %v1796
        %v1798 = vperm.slane %v1790, %v1797
        %v1799 = vrot.slane %v1782, 4
        %v1800 = vsel %vm1183, 0.0, %v1799
        %v1801 = vrot.slane %v1786, 4
        %v1802 = vsel %vm1183, 0.0, %v1801
        %v1803 = vrot.slane %v1794, 4
        %v1804 = vsel %vm1183, 0.0, %v1803
        %v1805 = vrot.slane %v1798, 4
        %v1806 = vsel %vm1183, 0.0, %v1805
        %v1807 = vrot.slane %v1174, 4
        %v1808 = vsel %vm1183, 0.0, %v1807
        %v1810 = vunpack.c.l.s4 1983009808
        %v1811 = vunpack.c.0.s8 %v1810
        %v1812 = vperm.slane %v1174, %v1811
        %v1814 = vunpack.c.l.s4 1983009808
        %v1815 = vunpack.c.0.s8 %v1814
        %v1816 = vperm.slane %v1808, %v1815
        %v1817 = vrot.slane %v1175, 4
        %v1818 = vsel %vm1183, 0.0, %v1817
        %v1820 = vunpack.c.l.s4 1983009808
        %v1821 = vunpack.c.0.s8 %v1820
        %v1822 = vperm.slane %v1175, %v1821
        %v1824 = vunpack.c.l.s4 1983009808
        %v1825 = vunpack.c.0.s8 %v1824
        %v1826 = vperm.slane %v1818, %v1825
        %v1827 = vrot.slane %v1822, 4
        %v1828 = vsel %vm1183, %v1827, %v1812
        %v1829 = vrot.slane %v1812, 4
        %v1830 = vsel %vm1183, %v1822, %v1829
        %v1832 = vunpack.c.l.s4 1934713408
        %v1833 = vunpack.c.0.s8 %v1832
        %v1834 = vperm.slane %v1828, %v1833
        %v1836 = vunpack.c.l.s4 1934713408
        %v1837 = vunpack.c.0.s8 %v1836
        %v1838 = vperm.slane %v1830, %v1837
        %v1839 = vrot.slane %v1826, 4
        %v1840 = vsel %vm1183, %v1839, %v1816
        %v1841 = vrot.slane %v1816, 4
        %v1842 = vsel %vm1183, %v1826, %v1841
        %v1844 = vunpack.c.l.s4 1934713408
        %v1845 = vunpack.c.0.s8 %v1844
        %v1846 = vperm.slane %v1840, %v1845
        %v1848 = vunpack.c.l.s4 1934713408
        %v1849 = vunpack.c.0.s8 %v1848
        %v1850 = vperm.slane %v1842, %v1849
        %v1851 = vrot.slane %v1834, 4
        %v1852 = vsel %vm1183, 0.0, %v1851
        %v1853 = vrot.slane %v1838, 4
        %v1854 = vsel %vm1183, 0.0, %v1853
        %v1855 = vrot.slane %v1846, 4
        %v1856 = vsel %vm1183, 0.0, %v1855
        %v1857 = vrot.slane %v1850, 4
        %v1858 = vsel %vm1183, 0.0, %v1857
        %v1859 = vrot.slane %v1176, 4
        %v1860 = vsel %vm1183, 0.0, %v1859
        %v1862 = vunpack.c.l.s4 1983009808
        %v1863 = vunpack.c.0.s8 %v1862
        %v1864 = vperm.slane %v1176, %v1863
        %v1866 = vunpack.c.l.s4 1983009808
        %v1867 = vunpack.c.0.s8 %v1866
        %v1868 = vperm.slane %v1860, %v1867
        %v1869 = vrot.slane %v1177, 4
        %v1870 = vsel %vm1183, 0.0, %v1869
        %v1872 = vunpack.c.l.s4 1983009808
        %v1873 = vunpack.c.0.s8 %v1872
        %v1874 = vperm.slane %v1177, %v1873
        %v1876 = vunpack.c.l.s4 1983009808
        %v1877 = vunpack.c.0.s8 %v1876
        %v1878 = vperm.slane %v1870, %v1877
        %v1879 = vrot.slane %v1874, 4
        %v1880 = vsel %vm1183, %v1879, %v1864
        %v1881 = vrot.slane %v1864, 4
        %v1882 = vsel %vm1183, %v1874, %v1881
        %v1884 = vunpack.c.l.s4 1934713408
        %v1885 = vunpack.c.0.s8 %v1884
        %v1886 = vperm.slane %v1880, %v1885
        %v1888 = vunpack.c.l.s4 1934713408
        %v1889 = vunpack.c.0.s8 %v1888
        %v1890 = vperm.slane %v1882, %v1889
        %v1891 = vrot.slane %v1878, 4
        %v1892 = vsel %vm1183, %v1891, %v1868
        %v1893 = vrot.slane %v1868, 4
        %v1894 = vsel %vm1183, %v1878, %v1893
        %v1896 = vunpack.c.l.s4 1934713408
        %v1897 = vunpack.c.0.s8 %v1896
        %v1898 = vperm.slane %v1892, %v1897
        %v1900 = vunpack.c.l.s4 1934713408
        %v1901 = vunpack.c.0.s8 %v1900
        %v1902 = vperm.slane %v1894, %v1901
        %v1903 = vrot.slane %v1886, 4
        %v1904 = vsel %vm1183, 0.0, %v1903
        %v1905 = vrot.slane %v1890, 4
        %v1906 = vsel %vm1183, 0.0, %v1905
        %v1907 = vrot.slane %v1898, 4
        %v1908 = vsel %vm1183, 0.0, %v1907
        %v1909 = vrot.slane %v1902, 4
        %v1910 = vsel %vm1183, 0.0, %v1909
        %v1911 = vrot.slane %v1178, 4
        %v1912 = vsel %vm1183, 0.0, %v1911
        %v1914 = vunpack.c.l.s4 1983009808
        %v1915 = vunpack.c.0.s8 %v1914
        %v1916 = vperm.slane %v1178, %v1915
        %v1918 = vunpack.c.l.s4 1983009808
        %v1919 = vunpack.c.0.s8 %v1918
        %v1920 = vperm.slane %v1912, %v1919
        %v1921 = vrot.slane %v1179, 4
        %v1922 = vsel %vm1183, 0.0, %v1921
        %v1924 = vunpack.c.l.s4 1983009808
        %v1925 = vunpack.c.0.s8 %v1924
        %v1926 = vperm.slane %v1179, %v1925
        %v1928 = vunpack.c.l.s4 1983009808
        %v1929 = vunpack.c.0.s8 %v1928
        %v1930 = vperm.slane %v1922, %v1929
        %v1931 = vrot.slane %v1926, 4
        %v1932 = vsel %vm1183, %v1931, %v1916
        %v1933 = vrot.slane %v1916, 4
        %v1934 = vsel %vm1183, %v1926, %v1933
        %v1936 = vunpack.c.l.s4 1934713408
        %v1937 = vunpack.c.0.s8 %v1936
        %v1938 = vperm.slane %v1932, %v1937
        %v1940 = vunpack.c.l.s4 1934713408
        %v1941 = vunpack.c.0.s8 %v1940
        %v1942 = vperm.slane %v1934, %v1941
        %v1943 = vrot.slane %v1930, 4
        %v1944 = vsel %vm1183, %v1943, %v1920
        %v1945 = vrot.slane %v1920, 4
        %v1946 = vsel %vm1183, %v1930, %v1945
        %v1948 = vunpack.c.l.s4 1934713408
        %v1949 = vunpack.c.0.s8 %v1948
        %v1950 = vperm.slane %v1944, %v1949
        %v1952 = vunpack.c.l.s4 1934713408
        %v1953 = vunpack.c.0.s8 %v1952
        %v1954 = vperm.slane %v1946, %v1953
        %v1955 = vrot.slane %v1938, 4
        %v1956 = vsel %vm1183, 0.0, %v1955
        %v1957 = vrot.slane %v1942, 4
        %v1958 = vsel %vm1183, 0.0, %v1957
        %v1959 = vrot.slane %v1950, 4
        %v1960 = vsel %vm1183, 0.0, %v1959
        %v1961 = vrot.slane %v1954, 4
        %v1962 = vsel %vm1183, 0.0, %v1961
        %v1963 = vrot.slane %v1180, 4
        %v1964 = vsel %vm1183, 0.0, %v1963
        %v1966 = vunpack.c.l.s4 1983009808
        %v1967 = vunpack.c.0.s8 %v1966
        %v1968 = vperm.slane %v1180, %v1967
        %v1970 = vunpack.c.l.s4 1983009808
        %v1971 = vunpack.c.0.s8 %v1970
        %v1972 = vperm.slane %v1964, %v1971
        %v1973 = vrot.slane %v1181, 4
        %v1974 = vsel %vm1183, 0.0, %v1973
        %v1976 = vunpack.c.l.s4 1983009808
        %v1977 = vunpack.c.0.s8 %v1976
        %v1978 = vperm.slane %v1181, %v1977
        %v1980 = vunpack.c.l.s4 1983009808
        %v1981 = vunpack.c.0.s8 %v1980
        %v1982 = vperm.slane %v1974, %v1981
        %v1983 = vrot.slane %v1978, 4
        %v1984 = vsel %vm1183, %v1983, %v1968
        %v1985 = vrot.slane %v1968, 4
        %v1986 = vsel %vm1183, %v1978, %v1985
        %v1988 = vunpack.c.l.s4 1934713408
        %v1989 = vunpack.c.0.s8 %v1988
        %v1990 = vperm.slane %v1984, %v1989
        %v1992 = vunpack.c.l.s4 1934713408
        %v1993 = vunpack.c.0.s8 %v1992
        %v1994 = vperm.slane %v1986, %v1993
        %v1995 = vrot.slane %v1982, 4
        %v1996 = vsel %vm1183, %v1995, %v1972
        %v1997 = vrot.slane %v1972, 4
        %v1998 = vsel %vm1183, %v1982, %v1997
        %v2000 = vunpack.c.l.s4 1934713408
        %v2001 = vunpack.c.0.s8 %v2000
        %v2002 = vperm.slane %v1996, %v2001
        %v2004 = vunpack.c.l.s4 1934713408
        %v2005 = vunpack.c.0.s8 %v2004
        %v2006 = vperm.slane %v1998, %v2005
        %v2007 = vrot.slane %v1990, 4
        %v2008 = vsel %vm1183, 0.0, %v2007
        %v2009 = vrot.slane %v1994, 4
        %v2010 = vsel %vm1183, 0.0, %v2009
        %v2011 = vrot.slane %v2002, 4
        %v2012 = vsel %vm1183, 0.0, %v2011
        %v2013 = vrot.slane %v2006, 4
        %v2014 = vsel %vm1183, 0.0, %v2013
        %v2015 = vsel %vm1183, %v1229, %v1210
        %v2017 = vunpack.c.l.s4 1983009808
        %v2018 = vunpack.c.0.s8 %v2017
        %v2019 = vperm.slane %v2015, %v2018
        %v2020 = vrot.slane %v1230, 4
        %v2021 = vsel %vm1183, %v2020, %v1228
        %v2023 = vunpack.c.l.s4 1983009808
        %v2024 = vunpack.c.0.s8 %v2023
        %v2025 = vperm.slane %v2021, %v2024
        %v2026 = vsel %vm1183, %v1233, %v1222
        %v2028 = vunpack.c.l.s4 1983009808
        %v2029 = vunpack.c.0.s8 %v2028
        %v2030 = vperm.slane %v2026, %v2029
        %v2031 = vrot.slane %v1234, 4
        %v2032 = vsel %vm1183, %v2031, %v1232
        %v2034 = vunpack.c.l.s4 1983009808
        %v2035 = vunpack.c.0.s8 %v2034
        %v2036 = vperm.slane %v2032, %v2035
        %v2037 = vrot.slane %v2025, 4
        %v2038 = vsel %vm1183, %v2037, %v2019
        %v2040 = vunpack.c.l.s4 1934713408
        %v2041 = vunpack.c.0.s8 %v2040
        %v2042 = vperm.slane %v2038, %v2041
        %v2043 = vrot.slane %v2036, 4
        %v2044 = vsel %vm1183, %v2043, %v2030
        %v2046 = vunpack.c.l.s4 1934713408
        %v2047 = vunpack.c.0.s8 %v2046
        %v2048 = vperm.slane %v2044, %v2047
        %v2049 = vrot.slane %v2048, 4
        %v2050 = vsel %vm1183, %v2049, %v2042
        %v2051 = vrot.slane %v2042, 4
        %v2052 = vsel %vm1183, %v2048, %v2051
        %v2053 = vsel %vm1183, %v1281, %v1262
        %v2055 = vunpack.c.l.s4 1983009808
        %v2056 = vunpack.c.0.s8 %v2055
        %v2057 = vperm.slane %v2053, %v2056
        %v2058 = vrot.slane %v1282, 4
        %v2059 = vsel %vm1183, %v2058, %v1280
        %v2061 = vunpack.c.l.s4 1983009808
        %v2062 = vunpack.c.0.s8 %v2061
        %v2063 = vperm.slane %v2059, %v2062
        %v2064 = vsel %vm1183, %v1285, %v1274
        %v2066 = vunpack.c.l.s4 1983009808
        %v2067 = vunpack.c.0.s8 %v2066
        %v2068 = vperm.slane %v2064, %v2067
        %v2069 = vrot.slane %v1286, 4
        %v2070 = vsel %vm1183, %v2069, %v1284
        %v2072 = vunpack.c.l.s4 1983009808
        %v2073 = vunpack.c.0.s8 %v2072
        %v2074 = vperm.slane %v2070, %v2073
        %v2075 = vrot.slane %v2063, 4
        %v2076 = vsel %vm1183, %v2075, %v2057
        %v2078 = vunpack.c.l.s4 1934713408
        %v2079 = vunpack.c.0.s8 %v2078
        %v2080 = vperm.slane %v2076, %v2079
        %v2081 = vrot.slane %v2074, 4
        %v2082 = vsel %vm1183, %v2081, %v2068
        %v2084 = vunpack.c.l.s4 1934713408
        %v2085 = vunpack.c.0.s8 %v2084
        %v2086 = vperm.slane %v2082, %v2085
        %v2087 = vrot.slane %v2086, 4
        %v2088 = vsel %vm1183, %v2087, %v2080
        %v2089 = vrot.slane %v2080, 4
        %v2090 = vsel %vm1183, %v2086, %v2089
        %v2091 = vsel %vm1183, %v1333, %v1314
        %v2093 = vunpack.c.l.s4 1983009808
        %v2094 = vunpack.c.0.s8 %v2093
        %v2095 = vperm.slane %v2091, %v2094
        %v2096 = vrot.slane %v1334, 4
        %v2097 = vsel %vm1183, %v2096, %v1332
        %v2099 = vunpack.c.l.s4 1983009808
        %v2100 = vunpack.c.0.s8 %v2099
        %v2101 = vperm.slane %v2097, %v2100
        %v2102 = vsel %vm1183, %v1337, %v1326
        %v2104 = vunpack.c.l.s4 1983009808
        %v2105 = vunpack.c.0.s8 %v2104
        %v2106 = vperm.slane %v2102, %v2105
        %v2107 = vrot.slane %v1338, 4
        %v2108 = vsel %vm1183, %v2107, %v1336
        %v2110 = vunpack.c.l.s4 1983009808
        %v2111 = vunpack.c.0.s8 %v2110
        %v2112 = vperm.slane %v2108, %v2111
        %v2113 = vrot.slane %v2101, 4
        %v2114 = vsel %vm1183, %v2113, %v2095
        %v2116 = vunpack.c.l.s4 1934713408
        %v2117 = vunpack.c.0.s8 %v2116
        %v2118 = vperm.slane %v2114, %v2117
        %v2119 = vrot.slane %v2112, 4
        %v2120 = vsel %vm1183, %v2119, %v2106
        %v2122 = vunpack.c.l.s4 1934713408
        %v2123 = vunpack.c.0.s8 %v2122
        %v2124 = vperm.slane %v2120, %v2123
        %v2125 = vrot.slane %v2124, 4
        %v2126 = vsel %vm1183, %v2125, %v2118
        %v2127 = vrot.slane %v2118, 4
        %v2128 = vsel %vm1183, %v2124, %v2127
        %v2129 = vsel %vm1183, %v1385, %v1366
        %v2131 = vunpack.c.l.s4 1983009808
        %v2132 = vunpack.c.0.s8 %v2131
        %v2133 = vperm.slane %v2129, %v2132
        %v2134 = vrot.slane %v1386, 4
        %v2135 = vsel %vm1183, %v2134, %v1384
        %v2137 = vunpack.c.l.s4 1983009808
        %v2138 = vunpack.c.0.s8 %v2137
        %v2139 = vperm.slane %v2135, %v2138
        %v2140 = vsel %vm1183, %v1389, %v1378
        %v2142 = vunpack.c.l.s4 1983009808
        %v2143 = vunpack.c.0.s8 %v2142
        %v2144 = vperm.slane %v2140, %v2143
        %v2145 = vrot.slane %v1390, 4
        %v2146 = vsel %vm1183, %v2145, %v1388
        %v2148 = vunpack.c.l.s4 1983009808
        %v2149 = vunpack.c.0.s8 %v2148
        %v2150 = vperm.slane %v2146, %v2149
        %v2151 = vrot.slane %v2139, 4
        %v2152 = vsel %vm1183, %v2151, %v2133
        %v2154 = vunpack.c.l.s4 1934713408
        %v2155 = vunpack.c.0.s8 %v2154
        %v2156 = vperm.slane %v2152, %v2155
        %v2157 = vrot.slane %v2150, 4
        %v2158 = vsel %vm1183, %v2157, %v2144
        %v2160 = vunpack.c.l.s4 1934713408
        %v2161 = vunpack.c.0.s8 %v2160
        %v2162 = vperm.slane %v2158, %v2161
        %v2163 = vrot.slane %v2162, 4
        %v2164 = vsel %vm1183, %v2163, %v2156
        %v2165 = vrot.slane %v2156, 4
        %v2166 = vsel %vm1183, %v2162, %v2165
        %v2167 = vsel %vm1183, %v1437, %v1418
        %v2169 = vunpack.c.l.s4 1983009808
        %v2170 = vunpack.c.0.s8 %v2169
        %v2171 = vperm.slane %v2167, %v2170
        %v2172 = vrot.slane %v1438, 4
        %v2173 = vsel %vm1183, %v2172, %v1436
        %v2175 = vunpack.c.l.s4 1983009808
        %v2176 = vunpack.c.0.s8 %v2175
        %v2177 = vperm.slane %v2173, %v2176
        %v2178 = vsel %vm1183, %v1441, %v1430
        %v2180 = vunpack.c.l.s4 1983009808
        %v2181 = vunpack.c.0.s8 %v2180
        %v2182 = vperm.slane %v2178, %v2181
        %v2183 = vrot.slane %v1442, 4
        %v2184 = vsel %vm1183, %v2183, %v1440
        %v2186 = vunpack.c.l.s4 1983009808
        %v2187 = vunpack.c.0.s8 %v2186
        %v2188 = vperm.slane %v2184, %v2187
        %v2189 = vrot.slane %v2177, 4
        %v2190 = vsel %vm1183, %v2189, %v2171
        %v2192 = vunpack.c.l.s4 1934713408
        %v2193 = vunpack.c.0.s8 %v2192
        %v2194 = vperm.slane %v2190, %v2193
        %v2195 = vrot.slane %v2188, 4
        %v2196 = vsel %vm1183, %v2195, %v2182
        %v2198 = vunpack.c.l.s4 1934713408
        %v2199 = vunpack.c.0.s8 %v2198
        %v2200 = vperm.slane %v2196, %v2199
        %v2201 = vrot.slane %v2200, 4
        %v2202 = vsel %vm1183, %v2201, %v2194
        %v2203 = vrot.slane %v2194, 4
        %v2204 = vsel %vm1183, %v2200, %v2203
        %v2205 = vsel %vm1183, %v1489, %v1470
        %v2207 = vunpack.c.l.s4 1983009808
        %v2208 = vunpack.c.0.s8 %v2207
        %v2209 = vperm.slane %v2205, %v2208
        %v2210 = vrot.slane %v1490, 4
        %v2211 = vsel %vm1183, %v2210, %v1488
        %v2213 = vunpack.c.l.s4 1983009808
        %v2214 = vunpack.c.0.s8 %v2213
        %v2215 = vperm.slane %v2211, %v2214
        %v2216 = vsel %vm1183, %v1493, %v1482
        %v2218 = vunpack.c.l.s4 1983009808
        %v2219 = vunpack.c.0.s8 %v2218
        %v2220 = vperm.slane %v2216, %v2219
        %v2221 = vrot.slane %v1494, 4
        %v2222 = vsel %vm1183, %v2221, %v1492
        %v2224 = vunpack.c.l.s4 1983009808
        %v2225 = vunpack.c.0.s8 %v2224
        %v2226 = vperm.slane %v2222, %v2225
        %v2227 = vrot.slane %v2215, 4
        %v2228 = vsel %vm1183, %v2227, %v2209
        %v2230 = vunpack.c.l.s4 1934713408
        %v2231 = vunpack.c.0.s8 %v2230
        %v2232 = vperm.slane %v2228, %v2231
        %v2233 = vrot.slane %v2226, 4
        %v2234 = vsel %vm1183, %v2233, %v2220
        %v2236 = vunpack.c.l.s4 1934713408
        %v2237 = vunpack.c.0.s8 %v2236
        %v2238 = vperm.slane %v2234, %v2237
        %v2239 = vrot.slane %v2238, 4
        %v2240 = vsel %vm1183, %v2239, %v2232
        %v2241 = vrot.slane %v2232, 4
        %v2242 = vsel %vm1183, %v2238, %v2241
        %v2243 = vsel %vm1183, %v1541, %v1522
        %v2245 = vunpack.c.l.s4 1983009808
        %v2246 = vunpack.c.0.s8 %v2245
        %v2247 = vperm.slane %v2243, %v2246
        %v2248 = vrot.slane %v1542, 4
        %v2249 = vsel %vm1183, %v2248, %v1540
        %v2251 = vunpack.c.l.s4 1983009808
        %v2252 = vunpack.c.0.s8 %v2251
        %v2253 = vperm.slane %v2249, %v2252
        %v2254 = vsel %vm1183, %v1545, %v1534
        %v2256 = vunpack.c.l.s4 1983009808
        %v2257 = vunpack.c.0.s8 %v2256
        %v2258 = vperm.slane %v2254, %v2257
        %v2259 = vrot.slane %v1546, 4
        %v2260 = vsel %vm1183, %v2259, %v1544
        %v2262 = vunpack.c.l.s4 1983009808
        %v2263 = vunpack.c.0.s8 %v2262
        %v2264 = vperm.slane %v2260, %v2263
        %v2265 = vrot.slane %v2253, 4
        %v2266 = vsel %vm1183, %v2265, %v2247
        %v2268 = vunpack.c.l.s4 1934713408
        %v2269 = vunpack.c.0.s8 %v2268
        %v2270 = vperm.slane %v2266, %v2269
        %v2271 = vrot.slane %v2264, 4
        %v2272 = vsel %vm1183, %v2271, %v2258
        %v2274 = vunpack.c.l.s4 1934713408
        %v2275 = vunpack.c.0.s8 %v2274
        %v2276 = vperm.slane %v2272, %v2275
        %v2277 = vrot.slane %v2276, 4
        %v2278 = vsel %vm1183, %v2277, %v2270
        %v2279 = vrot.slane %v2270, 4
        %v2280 = vsel %vm1183, %v2276, %v2279
        %v2281 = vsel %vm1183, %v1593, %v1574
        %v2283 = vunpack.c.l.s4 1983009808
        %v2284 = vunpack.c.0.s8 %v2283
        %v2285 = vperm.slane %v2281, %v2284
        %v2286 = vrot.slane %v1594, 4
        %v2287 = vsel %vm1183, %v2286, %v1592
        %v2289 = vunpack.c.l.s4 1983009808
        %v2290 = vunpack.c.0.s8 %v2289
        %v2291 = vperm.slane %v2287, %v2290
        %v2292 = vsel %vm1183, %v1597, %v1586
        %v2294 = vunpack.c.l.s4 1983009808
        %v2295 = vunpack.c.0.s8 %v2294
        %v2296 = vperm.slane %v2292, %v2295
        %v2297 = vrot.slane %v1598, 4
        %v2298 = vsel %vm1183, %v2297, %v1596
        %v2300 = vunpack.c.l.s4 1983009808
        %v2301 = vunpack.c.0.s8 %v2300
        %v2302 = vperm.slane %v2298, %v2301
        %v2303 = vrot.slane %v2291, 4
        %v2304 = vsel %vm1183, %v2303, %v2285
        %v2306 = vunpack.c.l.s4 1934713408
        %v2307 = vunpack.c.0.s8 %v2306
        %v2308 = vperm.slane %v2304, %v2307
        %v2309 = vrot.slane %v2302, 4
        %v2310 = vsel %vm1183, %v2309, %v2296
        %v2312 = vunpack.c.l.s4 1934713408
        %v2313 = vunpack.c.0.s8 %v2312
        %v2314 = vperm.slane %v2310, %v2313
        %v2315 = vrot.slane %v2314, 4
        %v2316 = vsel %vm1183, %v2315, %v2308
        %v2317 = vrot.slane %v2308, 4
        %v2318 = vsel %vm1183, %v2314, %v2317
        %v2319 = vsel %vm1183, %v1645, %v1626
        %v2321 = vunpack.c.l.s4 1983009808
        %v2322 = vunpack.c.0.s8 %v2321
        %v2323 = vperm.slane %v2319, %v2322
        %v2324 = vrot.slane %v1646, 4
        %v2325 = vsel %vm1183, %v2324, %v1644
        %v2327 = vunpack.c.l.s4 1983009808
        %v2328 = vunpack.c.0.s8 %v2327
        %v2329 = vperm.slane %v2325, %v2328
        %v2330 = vsel %vm1183, %v1649, %v1638
        %v2332 = vunpack.c.l.s4 1983009808
        %v2333 = vunpack.c.0.s8 %v2332
        %v2334 = vperm.slane %v2330, %v2333
        %v2335 = vrot.slane %v1650, 4
        %v2336 = vsel %vm1183, %v2335, %v1648
        %v2338 = vunpack.c.l.s4 1983009808
        %v2339 = vunpack.c.0.s8 %v2338
        %v2340 = vperm.slane %v2336, %v2339
        %v2341 = vrot.slane %v2329, 4
        %v2342 = vsel %vm1183, %v2341, %v2323
        %v2344 = vunpack.c.l.s4 1934713408
        %v2345 = vunpack.c.0.s8 %v2344
        %v2346 = vperm.slane %v2342, %v2345
        %v2347 = vrot.slane %v2340, 4
        %v2348 = vsel %vm1183, %v2347, %v2334
        %v2350 = vunpack.c.l.s4 1934713408
        %v2351 = vunpack.c.0.s8 %v2350
        %v2352 = vperm.slane %v2348, %v2351
        %v2353 = vrot.slane %v2352, 4
        %v2354 = vsel %vm1183, %v2353, %v2346
        %v2355 = vrot.slane %v2346, 4
        %v2356 = vsel %vm1183, %v2352, %v2355
        %v2357 = vsel %vm1183, %v1697, %v1678
        %v2359 = vunpack.c.l.s4 1983009808
        %v2360 = vunpack.c.0.s8 %v2359
        %v2361 = vperm.slane %v2357, %v2360
        %v2362 = vrot.slane %v1698, 4
        %v2363 = vsel %vm1183, %v2362, %v1696
        %v2365 = vunpack.c.l.s4 1983009808
        %v2366 = vunpack.c.0.s8 %v2365
        %v2367 = vperm.slane %v2363, %v2366
        %v2368 = vsel %vm1183, %v1701, %v1690
        %v2370 = vunpack.c.l.s4 1983009808
        %v2371 = vunpack.c.0.s8 %v2370
        %v2372 = vperm.slane %v2368, %v2371
        %v2373 = vrot.slane %v1702, 4
        %v2374 = vsel %vm1183, %v2373, %v1700
        %v2376 = vunpack.c.l.s4 1983009808
        %v2377 = vunpack.c.0.s8 %v2376
        %v2378 = vperm.slane %v2374, %v2377
        %v2379 = vrot.slane %v2367, 4
        %v2380 = vsel %vm1183, %v2379, %v2361
        %v2382 = vunpack.c.l.s4 1934713408
        %v2383 = vunpack.c.0.s8 %v2382
        %v2384 = vperm.slane %v2380, %v2383
        %v2385 = vrot.slane %v2378, 4
        %v2386 = vsel %vm1183, %v2385, %v2372
        %v2388 = vunpack.c.l.s4 1934713408
        %v2389 = vunpack.c.0.s8 %v2388
        %v2390 = vperm.slane %v2386, %v2389
        %v2391 = vrot.slane %v2390, 4
        %v2392 = vsel %vm1183, %v2391, %v2384
        %v2393 = vrot.slane %v2384, 4
        %v2394 = vsel %vm1183, %v2390, %v2393
        %v2395 = vsel %vm1183, %v1749, %v1730
        %v2397 = vunpack.c.l.s4 1983009808
        %v2398 = vunpack.c.0.s8 %v2397
        %v2399 = vperm.slane %v2395, %v2398
        %v2400 = vrot.slane %v1750, 4
        %v2401 = vsel %vm1183, %v2400, %v1748
        %v2403 = vunpack.c.l.s4 1983009808
        %v2404 = vunpack.c.0.s8 %v2403
        %v2405 = vperm.slane %v2401, %v2404
        %v2406 = vsel %vm1183, %v1753, %v1742
        %v2408 = vunpack.c.l.s4 1983009808
        %v2409 = vunpack.c.0.s8 %v2408
        %v2410 = vperm.slane %v2406, %v2409
        %v2411 = vrot.slane %v1754, 4
        %v2412 = vsel %vm1183, %v2411, %v1752
        %v2414 = vunpack.c.l.s4 1983009808
        %v2415 = vunpack.c.0.s8 %v2414
        %v2416 = vperm.slane %v2412, %v2415
        %v2417 = vrot.slane %v2405, 4
        %v2418 = vsel %vm1183, %v2417, %v2399
        %v2420 = vunpack.c.l.s4 1934713408
        %v2421 = vunpack.c.0.s8 %v2420
        %v2422 = vperm.slane %v2418, %v2421
        %v2423 = vrot.slane %v2416, 4
        %v2424 = vsel %vm1183, %v2423, %v2410
        %v2426 = vunpack.c.l.s4 1934713408
        %v2427 = vunpack.c.0.s8 %v2426
        %v2428 = vperm.slane %v2424, %v2427
        %v2429 = vrot.slane %v2428, 4
        %v2430 = vsel %vm1183, %v2429, %v2422
        %v2431 = vrot.slane %v2422, 4
        %v2432 = vsel %vm1183, %v2428, %v2431
        %v2433 = vsel %vm1183, %v1801, %v1782
        %v2435 = vunpack.c.l.s4 1983009808
        %v2436 = vunpack.c.0.s8 %v2435
        %v2437 = vperm.slane %v2433, %v2436
        %v2438 = vrot.slane %v1802, 4
        %v2439 = vsel %vm1183, %v2438, %v1800
        %v2441 = vunpack.c.l.s4 1983009808
        %v2442 = vunpack.c.0.s8 %v2441
        %v2443 = vperm.slane %v2439, %v2442
        %v2444 = vsel %vm1183, %v1805, %v1794
        %v2446 = vunpack.c.l.s4 1983009808
        %v2447 = vunpack.c.0.s8 %v2446
        %v2448 = vperm.slane %v2444, %v2447
        %v2449 = vrot.slane %v1806, 4
        %v2450 = vsel %vm1183, %v2449, %v1804
        %v2452 = vunpack.c.l.s4 1983009808
        %v2453 = vunpack.c.0.s8 %v2452
        %v2454 = vperm.slane %v2450, %v2453
        %v2455 = vrot.slane %v2443, 4
        %v2456 = vsel %vm1183, %v2455, %v2437
        %v2458 = vunpack.c.l.s4 1934713408
        %v2459 = vunpack.c.0.s8 %v2458
        %v2460 = vperm.slane %v2456, %v2459
        %v2461 = vrot.slane %v2454, 4
        %v2462 = vsel %vm1183, %v2461, %v2448
        %v2464 = vunpack.c.l.s4 1934713408
        %v2465 = vunpack.c.0.s8 %v2464
        %v2466 = vperm.slane %v2462, %v2465
        %v2467 = vrot.slane %v2466, 4
        %v2468 = vsel %vm1183, %v2467, %v2460
        %v2469 = vrot.slane %v2460, 4
        %v2470 = vsel %vm1183, %v2466, %v2469
        %v2471 = vsel %vm1183, %v1853, %v1834
        %v2473 = vunpack.c.l.s4 1983009808
        %v2474 = vunpack.c.0.s8 %v2473
        %v2475 = vperm.slane %v2471, %v2474
        %v2476 = vrot.slane %v1854, 4
        %v2477 = vsel %vm1183, %v2476, %v1852
        %v2479 = vunpack.c.l.s4 1983009808
        %v2480 = vunpack.c.0.s8 %v2479
        %v2481 = vperm.slane %v2477, %v2480
        %v2482 = vsel %vm1183, %v1857, %v1846
        %v2484 = vunpack.c.l.s4 1983009808
        %v2485 = vunpack.c.0.s8 %v2484
        %v2486 = vperm.slane %v2482, %v2485
        %v2487 = vrot.slane %v1858, 4
        %v2488 = vsel %vm1183, %v2487, %v1856
        %v2490 = vunpack.c.l.s4 1983009808
        %v2491 = vunpack.c.0.s8 %v2490
        %v2492 = vperm.slane %v2488, %v2491
        %v2493 = vrot.slane %v2481, 4
        %v2494 = vsel %vm1183, %v2493, %v2475
        %v2496 = vunpack.c.l.s4 1934713408
        %v2497 = vunpack.c.0.s8 %v2496
        %v2498 = vperm.slane %v2494, %v2497
        %v2499 = vrot.slane %v2492, 4
        %v2500 = vsel %vm1183, %v2499, %v2486
        %v2502 = vunpack.c.l.s4 1934713408
        %v2503 = vunpack.c.0.s8 %v2502
        %v2504 = vperm.slane %v2500, %v2503
        %v2505 = vrot.slane %v2504, 4
        %v2506 = vsel %vm1183, %v2505, %v2498
        %v2507 = vrot.slane %v2498, 4
        %v2508 = vsel %vm1183, %v2504, %v2507
        %v2509 = vsel %vm1183, %v1905, %v1886
        %v2511 = vunpack.c.l.s4 1983009808
        %v2512 = vunpack.c.0.s8 %v2511
        %v2513 = vperm.slane %v2509, %v2512
        %v2514 = vrot.slane %v1906, 4
        %v2515 = vsel %vm1183, %v2514, %v1904
        %v2517 = vunpack.c.l.s4 1983009808
        %v2518 = vunpack.c.0.s8 %v2517
        %v2519 = vperm.slane %v2515, %v2518
        %v2520 = vsel %vm1183, %v1909, %v1898
        %v2522 = vunpack.c.l.s4 1983009808
        %v2523 = vunpack.c.0.s8 %v2522
        %v2524 = vperm.slane %v2520, %v2523
        %v2525 = vrot.slane %v1910, 4
        %v2526 = vsel %vm1183, %v2525, %v1908
        %v2528 = vunpack.c.l.s4 1983009808
        %v2529 = vunpack.c.0.s8 %v2528
        %v2530 = vperm.slane %v2526, %v2529
        %v2531 = vrot.slane %v2519, 4
        %v2532 = vsel %vm1183, %v2531, %v2513
        %v2534 = vunpack.c.l.s4 1934713408
        %v2535 = vunpack.c.0.s8 %v2534
        %v2536 = vperm.slane %v2532, %v2535
        %v2537 = vrot.slane %v2530, 4
        %v2538 = vsel %vm1183, %v2537, %v2524
        %v2540 = vunpack.c.l.s4 1934713408
        %v2541 = vunpack.c.0.s8 %v2540
        %v2542 = vperm.slane %v2538, %v2541
        %v2543 = vrot.slane %v2542, 4
        %v2544 = vsel %vm1183, %v2543, %v2536
        %v2545 = vrot.slane %v2536, 4
        %v2546 = vsel %vm1183, %v2542, %v2545
        %v2547 = vsel %vm1183, %v1957, %v1938
        %v2549 = vunpack.c.l.s4 1983009808
        %v2550 = vunpack.c.0.s8 %v2549
        %v2551 = vperm.slane %v2547, %v2550
        %v2552 = vrot.slane %v1958, 4
        %v2553 = vsel %vm1183, %v2552, %v1956
        %v2555 = vunpack.c.l.s4 1983009808
        %v2556 = vunpack.c.0.s8 %v2555
        %v2557 = vperm.slane %v2553, %v2556
        %v2558 = vsel %vm1183, %v1961, %v1950
        %v2560 = vunpack.c.l.s4 1983009808
        %v2561 = vunpack.c.0.s8 %v2560
        %v2562 = vperm.slane %v2558, %v2561
        %v2563 = vrot.slane %v1962, 4
        %v2564 = vsel %vm1183, %v2563, %v1960
        %v2566 = vunpack.c.l.s4 1983009808
        %v2567 = vunpack.c.0.s8 %v2566
        %v2568 = vperm.slane %v2564, %v2567
        %v2569 = vrot.slane %v2557, 4
        %v2570 = vsel %vm1183, %v2569, %v2551
        %v2572 = vunpack.c.l.s4 1934713408
        %v2573 = vunpack.c.0.s8 %v2572
        %v2574 = vperm.slane %v2570, %v2573
        %v2575 = vrot.slane %v2568, 4
        %v2576 = vsel %vm1183, %v2575, %v2562
        %v2578 = vunpack.c.l.s4 1934713408
        %v2579 = vunpack.c.0.s8 %v2578
        %v2580 = vperm.slane %v2576, %v2579
        %v2581 = vrot.slane %v2580, 4
        %v2582 = vsel %vm1183, %v2581, %v2574
        %v2583 = vrot.slane %v2574, 4
        %v2584 = vsel %vm1183, %v2580, %v2583
        %v2585 = vsel %vm1183, %v2009, %v1990
        %v2587 = vunpack.c.l.s4 1983009808
        %v2588 = vunpack.c.0.s8 %v2587
        %v2589 = vperm.slane %v2585, %v2588
        %v2590 = vrot.slane %v2010, 4
        %v2591 = vsel %vm1183, %v2590, %v2008
        %v2593 = vunpack.c.l.s4 1983009808
        %v2594 = vunpack.c.0.s8 %v2593
        %v2595 = vperm.slane %v2591, %v2594
        %v2596 = vsel %vm1183, %v2013, %v2002
        %v2598 = vunpack.c.l.s4 1983009808
        %v2599 = vunpack.c.0.s8 %v2598
        %v2600 = vperm.slane %v2596, %v2599
        %v2601 = vrot.slane %v2014, 4
        %v2602 = vsel %vm1183, %v2601, %v2012
        %v2604 = vunpack.c.l.s4 1983009808
        %v2605 = vunpack.c.0.s8 %v2604
        %v2606 = vperm.slane %v2602, %v2605
        %v2607 = vrot.slane %v2595, 4
        %v2608 = vsel %vm1183, %v2607, %v2589
        %v2610 = vunpack.c.l.s4 1934713408
        %v2611 = vunpack.c.0.s8 %v2610
        %v2612 = vperm.slane %v2608, %v2611
        %v2613 = vrot.slane %v2606, 4
        %v2614 = vsel %vm1183, %v2613, %v2600
        %v2616 = vunpack.c.l.s4 1934713408
        %v2617 = vunpack.c.0.s8 %v2616
        %v2618 = vperm.slane %v2614, %v2617
        %v2619 = vrot.slane %v2618, 4
        %v2620 = vsel %vm1183, %v2619, %v2612
        %v2621 = vrot.slane %v2612, 4
        %v2622 = vsel %vm1183, %v2618, %v2621
        %v2623 = vpack.c.bf16 %v2050, %v2050
        %v2624 = vpack.c.bf16 %v2088, %v2088
        %v2625 = vpack.c.bf16 %v2126, %v2126
        %v2626 = vpack.c.bf16 %v2164, %v2164
        %v2627 = vpack.c.bf16 %v2202, %v2202
        %v2628 = vpack.c.bf16 %v2240, %v2240
        %v2629 = vpack.c.bf16 %v2278, %v2278
        %v2630 = vpack.c.bf16 %v2316, %v2316
        %v2631 = vpack.c.bf16 %v2354, %v2354
        %v2632 = vpack.c.bf16 %v2392, %v2392
        %v2633 = vpack.c.bf16 %v2430, %v2430
        %v2634 = vpack.c.bf16 %v2468, %v2468
        %v2635 = vpack.c.bf16 %v2506, %v2506
        %v2636 = vpack.c.bf16 %v2544, %v2544
        %v2637 = vpack.c.bf16 %v2582, %v2582
        %v2638 = vpack.c.bf16 %v2620, %v2620
        %v2639 = vpack.c.bf16 %v2052, %v2052
        %v2640 = vpack.c.bf16 %v2090, %v2090
        %v2641 = vpack.c.bf16 %v2128, %v2128
        %v2642 = vpack.c.bf16 %v2166, %v2166
        %v2643 = vpack.c.bf16 %v2204, %v2204
        %v2644 = vpack.c.bf16 %v2242, %v2242
        %v2645 = vpack.c.bf16 %v2280, %v2280
        %v2646 = vpack.c.bf16 %v2318, %v2318
        %v2647 = vpack.c.bf16 %v2356, %v2356
        %v2648 = vpack.c.bf16 %v2394, %v2394
        %v2649 = vpack.c.bf16 %v2432, %v2432
        %v2650 = vpack.c.bf16 %v2470, %v2470
        %v2651 = vpack.c.bf16 %v2508, %v2508
        %v2652 = vpack.c.bf16 %v2546, %v2546
        %v2653 = vpack.c.bf16 %v2584, %v2584
        %v2654 = vpack.c.bf16 %v2622, %v2622
        %2655 = vst [vmem:[%s335] sm:$0xf] %v2623
        %2656 = vst [vmem:[%s335 + $0x4] sm:$0xf] %v2624
        %2657 = vst [vmem:[%s335 + $0x8] sm:$0xf] %v2625
        %2658 = vst [vmem:[%s335 + $0xc] sm:$0xf] %v2626
        %2659 = vst [vmem:[%s335 + $0x10] sm:$0xf] %v2627
        %2660 = vst [vmem:[%s335 + $0x14] sm:$0xf] %v2628
        %2661 = vst [vmem:[%s335 + $0x18] sm:$0xf] %v2629
        %2662 = vst [vmem:[%s335 + $0x1c] sm:$0xf] %v2630
        %2663 = vst [vmem:[%s335 + $0x20] sm:$0xf] %v2631
        %2664 = vst [vmem:[%s335 + $0x24] sm:$0xf] %v2632
        %2665 = vst [vmem:[%s335 + $0x28] sm:$0xf] %v2633
        %2666 = vst [vmem:[%s335 + $0x2c] sm:$0xf] %v2634
        %2667 = vst [vmem:[%s335 + $0x30] sm:$0xf] %v2635
        %2668 = vst [vmem:[%s335 + $0x34] sm:$0xf] %v2636
        %2669 = vst [vmem:[%s335 + $0x38] sm:$0xf] %v2637
        %2670 = vst [vmem:[%s335 + $0x3c] sm:$0xf] %v2638
        %2671 = vst [vmem:[%s335 + $0x40] sm:$0xf] %v2639
        %2672 = vst [vmem:[%s335 + $0x44] sm:$0xf] %v2640
        %2673 = vst [vmem:[%s335 + $0x48] sm:$0xf] %v2641
        %2674 = vst [vmem:[%s335 + $0x4c] sm:$0xf] %v2642
        %2675 = vst [vmem:[%s335 + $0x50] sm:$0xf] %v2643
        %2676 = vst [vmem:[%s335 + $0x54] sm:$0xf] %v2644
        %2677 = vst [vmem:[%s335 + $0x58] sm:$0xf] %v2645
        %2678 = vst [vmem:[%s335 + $0x5c] sm:$0xf] %v2646
        %2679 = vst [vmem:[%s335 + $0x60] sm:$0xf] %v2647
        %2680 = vst [vmem:[%s335 + $0x64] sm:$0xf] %v2648
        %2681 = vst [vmem:[%s335 + $0x68] sm:$0xf] %v2649
        %2682 = vst [vmem:[%s335 + $0x6c] sm:$0xf] %v2650
        %2683 = vst [vmem:[%s335 + $0x70] sm:$0xf] %v2651
        %2684 = vst [vmem:[%s335 + $0x74] sm:$0xf] %v2652
        %2685 = vst [vmem:[%s335 + $0x78] sm:$0xf] %v2653
        %2686 = vst [vmem:[%s335 + $0x7c] sm:$0xf] %v2654
        %s2687 = sand.u32 %s154, 1
        %s2688 = scalar_lea.sflag [#allocation4], %s2687
        %s2689 = sand.u32 %s154, 1
        %s2690 = smul.addr %s2689, 128
        %s2691 = scalar_lea.vmem [#allocation9], %s2690
        // Predicated region
        $region53: #{tpu_custom_call.1} parent=35 // pred_check
          %p2692 = pneg %p164
        $region54: #{tpu_custom_call.1} parent=35 // pred_check_branch
          %2694 = sbr.rel (%p2692) target = $region56
        $region55: #{tpu_custom_call.1} parent=35 // pred_region
          #allocation11 [shape = 'u32[6]{0}', space=smem, size = 0x18, scoped, tag = 'DMA stride descriptor']
          %s2695 = smul.u32 16, %s29
          %2697 = vsyncadd %s2688, 0
          %s2698 = smul.addr %s28, 64
          %s2699 = sadd.s32 %s2695, %s2698
          %s2700 = smul.addr %s27, 128
          %s2701 = sadd.s32 %s2699, %s2700
          %s2702 = smul.addr %s2701, 4
          %s2703 = scalar_lea.hbm %s4, %s2702
          %s2705 = sshll.u32 1, 14
          %s2706 = sxor.u32 4294967295, %s2705
          %s2709 = sshll.u32 7, 18
          %s2710 = sxor.u32 4294967295, %s2709
          %s2711 = sand.u32 0, %s2710
          %s2713 = sor.u32 %s2711, 0
          %s2714 = sshll.u32 %s2691, 4
          %s2715 = int_to_ptr.vmem [resolvable:$true] %s2714
          %s2716 = sshll.u32 %s2703, 4
          %s2717 = int_to_ptr.hbm [resolvable:$true] %s2716
          %2723 = sst [smem:[#allocation11]] 1024
          %s2724 = scalar_lea.smem [#allocation11], 1
          %2725 = sst [smem:[%s2724]] 2048
          %s2726 = scalar_lea.smem [#allocation11], 2
          %2727 = sst [smem:[%s2726]] 16
          %s2728 = scalar_lea.smem [#allocation11], 3
          %2729 = sst [smem:[%s2728]] 64
          %s2730 = scalar_lea.smem [#allocation11], 4
          %2731 = sst [smem:[%s2730]] 64
          %s2732 = scalar_lea.smem [#allocation11], 5
          %2733 = sst [smem:[%s2732]] 4
          %2735 = dma.general %s2715, 2048, %s2717, %s2688, [#allocation10], [#allocation11], %s2713, 0
        $region56: #{tpu_custom_call.1} parent=35 // pred_fallthru
          _
      $region36: #{tpu_custom_call.1} parent=5 // pred_fallthru
        _
      %p2736 = scmp.le.s32.totalorder 2, %s17
      // Predicated region
      $region57: #{tpu_custom_call.1} parent=5 // pred_check
        %p2737 = pneg %p2736
      $region58: #{tpu_custom_call.1} parent=5 // pred_check_branch
        %2739 = sbr.rel (%p2737) target = $region60
      $region59: #{tpu_custom_call.1} parent=5 // pred_region
        %s2740 = ssub.s32 %s17, 2
        // Predicated region
        $region61: #{tpu_custom_call.1} parent=59 // pred_check
          %p2741 = pneg %p170
        $region62: #{tpu_custom_call.1} parent=59 // pred_check_branch
          %2743 = sbr.rel (%p2741) target = $region64
        $region63: #{tpu_custom_call.1} parent=59 // pred_region
          %s2744 = sand.u32 %s155, 1
          %s2745 = scalar_lea.sflag [#allocation4], %s2744
          %s2746 = sand.u32 %s155, 1
          %s2747 = smul.addr %s2746, 128
          %s2748 = scalar_lea.vmem [#allocation9], %s2747
          %2750 = dma.done %s2745, 2048
        $region64: #{tpu_custom_call.1} parent=59 // pred_fallthru
          _
      $region60: #{tpu_custom_call.1} parent=5 // pred_fallthru
        _
    $region6: #{tpu_custom_call.1} parent=1 // loop_footer
      %s21 = sadd.s32 1, %s17
    $region7: #{tpu_custom_call.1} parent=1 // loop_footer_branch
      %16 = sbr.rel target = $region3
    $region8: #{tpu_custom_call.1} parent=1 // loop_exit
      _
    %2751 = vsyncpa [#allocation3], 1
    %s2752 = scalar_lea.sflag [#allocation3], 1
    %2753 = vsyncpa %s2752, 1
    %2754 = vsyncpa [#allocation6], 1
    %2755 = vsyncpa [#allocation4], 1
    %s2756 = scalar_lea.sflag [#allocation4], 1
    %2757 = vsyncpa %s2756, 1

</llo_original>
